<compile_context>
chip_gen: v7x
topology: tpu7x:2x2x1
jax: 0.10.0
libtpu: 0.0.40
codegen_flags: <defaults>
</compile_context>

<pallas_src>
import functools
import numpy as np
import jax
import jax.numpy as jnp
from jax.experimental import pallas as pl
from jax.experimental.pallas import tpu as pltpu  # noqa: F401  (TPU backend target)

GATE = 128  # per-gate padded lane slab (LSTM hidden H=64 padded to 128 lanes)


# ---------------------------------------------------------------------------
# Fused kernel: Conv1(+BN+ReLU+Pool) -> Conv2(+BN+ReLU+Pool) -> LSTM -> FC
# ---------------------------------------------------------------------------
def _make_kernel(B, T):
    T2, S = T // 2, T // 4
    BT2 = B * T2

    def kernel(xpk_ref, w1_ref, s1_ref, t1_ref,
               shp_ref, shn_ref, w2_ref, s2_ref, t2_ref,
               sele_ref, selo_ref, wih_ref, whh_ref, bg_ref,
               wfc_ref, bfc_ref, o_ref):
        # ---- Conv1 (k=3, pad=1) + BN + ReLU: one batched matmul over B*T rows.
        # xpk rows are ordered [all even t | all odd t] (batch-major inside each
        # half) so MaxPool1d(2) is a half-slab max of two unit-stride slices.
        y1 = jnp.dot(xpk_ref[...], w1_ref[...],
                     preferred_element_type=jnp.float32)                      # (B*T, 128)
        y1 = jnp.maximum(y1 * s1_ref[...] + t1_ref[...], 0.0)
        p1 = jnp.maximum(y1[:BT2, :], y1[BT2:, :])                            # (B*T2, 128)

        # ---- Conv2 (k=3, pad=1) + BN + ReLU: +/-1 taps via constant shift
        # matmuls (batch-boundary aware), lane-concat -> single K=384 matmul.
        prev = jnp.dot(shp_ref[...], p1, preferred_element_type=jnp.float32)  # (B*T2, 128)
        nxt = jnp.dot(shn_ref[...], p1, preferred_element_type=jnp.float32)   # (B*T2, 128)
        taps = jnp.concatenate([prev, p1, nxt], axis=-1)                      # (B*T2, 384)
        y2 = jnp.dot(taps, w2_ref[...], preferred_element_type=jnp.float32)   # (B*T2, 64)
        y2 = jnp.maximum(y2 * s2_ref[...] + t2_ref[...], 0.0)

        # ---- MaxPool1d(2) + reorder to step-major (s, b) rows: selection matmuls.
        h2 = jnp.maximum(
            jnp.dot(sele_ref[...], y2, preferred_element_type=jnp.float32),
            jnp.dot(selo_ref[...], y2, preferred_element_type=jnp.float32))   # (B*S, 64)

        # ---- LSTM: hoisted input projection for all timesteps (one matmul);
        # gates live in their own 128-lane slabs -> no mid-vreg gate slices.
        xg = (jnp.dot(h2, wih_ref[...], preferred_element_type=jnp.float32)
              + bg_ref[...])                                                  # (B*S, 4*GATE)

        h = jnp.zeros((B, GATE), jnp.float32)
        c = jnp.zeros((B, GATE), jnp.float32)
        # TODO(synk): switch to lax.fori_loop(..., unroll=True) carrying (h, c) if S grows large.
        for t in range(S):
            gates = (xg[t * B:(t + 1) * B, :]
                     + jnp.dot(h, whh_ref[...],
                               preferred_element_type=jnp.float32))           # (B, 4*GATE)
            i_g = jax.nn.sigmoid(gates[:, 0 * GATE:1 * GATE])
            f_g = jax.nn.sigmoid(gates[:, 1 * GATE:2 * GATE])
            g_g = jnp.tanh(gates[:, 2 * GATE:3 * GATE])
            o_g = jax.nn.sigmoid(gates[:, 3 * GATE:4 * GATE])
            c = f_g * c + i_g * g_g
            h = o_g * jnp.tanh(c)

        # ---- FC head (lane-padded to 128 lanes; wrapper slices to num_classes).
        o_ref[...] = (jnp.dot(h, wfc_ref[...], preferred_element_type=jnp.float32)
                      + bfc_ref[...]).astype(o_ref.dtype)

    return kernel


# ---------------------------------------------------------------------------
# One-time parameter folding / packing (kept out of the per-call path)
# ---------------------------------------------------------------------------
def prepare_params(p, eps=1e-5):
    Cin = p["w1"].shape[1]
    C1 = p["w1"].shape[2]           # 128
    Cmid = p["w2"].shape[1]         # 128
    H = p["whh"].shape[0]           # 64
    C = p["wfc"].shape[1]
    assert H <= GATE
    Cp = max(GATE, ((C + 127) // 128) * 128)

    # Fold BN (inference, running stats) and the conv bias into scale/shift.
    s1 = p["bn1_gamma"] / jnp.sqrt(p["bn1_var"] + eps)
    t1 = (p["b1"] - p["bn1_mean"]) * s1 + p["bn1_beta"]
    s2 = p["bn2_gamma"] / jnp.sqrt(p["bn2_var"] + eps)
    t2 = (p["b2"] - p["bn2_mean"]) * s2 + p["bn2_beta"]

    def pad_gates(w):  # (..., 4H) -> (..., 4*GATE): one gate per 128-lane slab
        out = jnp.zeros(w.shape[:-1] + (4 * GATE,), jnp.float32)
        for g in range(4):
            out = out.at[..., g * GATE:g * GATE + H].set(w[..., g * H:(g + 1) * H])
        return out

    wih = pad_gates(p["wih"])                                                        # (64, 512)
    whh = jnp.zeros((GATE, 4 * GATE), jnp.float32).at[:H].set(pad_gates(p["whh"]))   # (128, 512)
    bg = pad_gates(p["bg"])                                                          # (1, 512)
    wfc = jnp.zeros((GATE, Cp), jnp.float32).at[:H, :C].set(p["wfc"])                # (128, Cp)
    bfc = jnp.zeros((1, Cp), jnp.float32).at[:, :C].set(p["bfc"])

    return {
        "w1": p["w1"].reshape(3 * Cin, C1), "s1": s1, "t1": t1,
        "w2": p["w2"].reshape(3 * Cmid, p["w2"].shape[2]), "s2": s2, "t2": t2,
        "wih": wih, "whh": whh, "bg": bg, "wfc": wfc, "bfc": bfc,
    }


# ---------------------------------------------------------------------------
# Wrapper: per-call im2col / row-reorder of x + one pallas_call
# ---------------------------------------------------------------------------
@functools.partial(jax.jit, static_argnums=(2,))
def cnn_lstm_forward(x, pp, num_classes):
    B, T, Cin = x.shape
    assert T % 4 == 0, "seq_len must be divisible by 4 (two MaxPool1d(2) stages)"
    T2, S = T // 2, T // 4
    BT2, BS = B * T2, B * S
    Cp = pp["wfc"].shape[1]

    # im2col of the tiny raw input; rows ordered [all even t | all odd t]
    # (batch-major inside each half) so pool1 is a half-slab max in the kernel.
    xpad = jnp.pad(x, ((0, 0), (1, 1), (0, 0)))
    taps = jnp.concatenate([xpad[:, 0:T], xpad[:, 1:T + 1], xpad[:, 2:T + 2]],
                           axis=-1)                                           # (B, T, 3*Cin)
    ev = taps[:, 0::2, :].reshape(BT2, 3 * Cin)
    od = taps[:, 1::2, :].reshape(BT2, 3 * Cin)
    xpk = jnp.concatenate([ev, od], axis=0)                                   # (B*T, 3*Cin)

    # Shape-only 0/1 gather constants (trace-time numpy -> baked as XLA constants).
    r = np.arange(BT2)[:, None]
    cix = np.arange(BT2)[None, :]
    same = (r // T2) == (cix // T2)
    sh_prev = ((cix == r - 1) & same).astype(np.float32)   # row tau <- tau-1, 0 at tau=0
    sh_next = ((cix == r + 1) & same).astype(np.float32)   # row tau <- tau+1, 0 at tau=T2-1
    j = np.arange(BS)[:, None]
    k = np.arange(BT2)[None, :]
    src = (j % B) * T2 + 2 * (j // B)                      # output row j=(s,b) <- conv2 row (b, 2s)
    sel_e = (k == src).astype(np.float32)
    sel_o = (k == src + 1).astype(np.float32)

    out = pl.pallas_call(
        _make_kernel(B, T),
        out_shape=jax.ShapeDtypeStruct((B, Cp), jnp.float32),
    )(xpk, pp["w1"], pp["s1"], pp["t1"], sh_prev, sh_next, pp["w2"], pp["s2"],
      pp["t2"], sel_e, sel_o, pp["wih"], pp["whh"], pp["bg"], pp["wfc"], pp["bfc"])
    return out[:, :num_classes]


# ---------------------------------------------------------------------------
# Parameter init (deterministic, synthetic)
# ---------------------------------------------------------------------------
def init_params(key, input_size, num_classes):
    ks = jax.random.split(key, 16)

    def rnd(k, shape, scale=0.1):
        return scale * jax.random.normal(k, shape, dtype=jnp.float32)

    p = {}
    # conv block 1: input_size -> 128
    p["w1"] = rnd(ks[0], (3, input_size, 128))
    p["b1"] = rnd(ks[1], (1, 128))
    p["bn1_gamma"] = 1.0 + rnd(ks[2], (1, 128))
    p["bn1_beta"] = rnd(ks[3], (1, 128))
    p["bn1_mean"] = rnd(ks[4], (1, 128))
    p["bn1_var"] = 1.0 + jnp.abs(rnd(ks[5], (1, 128)))
    # conv block 2: 128 -> 64
    p["w2"] = rnd(ks[6], (3, 128, 64))
    p["b2"] = rnd(ks[7], (1, 64))
    p["bn2_gamma"] = 1.0 + rnd(ks[8], (1, 64))
    p["bn2_beta"] = rnd(ks[9], (1, 64))
    p["bn2_mean"] = rnd(ks[10], (1, 64))
    p["bn2_var"] = 1.0 + jnp.abs(rnd(ks[11], (1, 64)))
    # LSTM: hidden=64, gate-concatenated (i|f|g|o), weights stored (H_in, 4H)
    p["wih"] = rnd(ks[12], (64, 256))
    p["whh"] = rnd(ks[13], (64, 256))
    p["bg"] = rnd(ks[14], (1, 256))        # b_ih + b_hh combined
    # FC head
    p["wfc"] = rnd(ks[15], (64, num_classes))
    p["bfc"] = jnp.zeros((1, num_classes), jnp.float32)
    return p


# ---------------------------------------------------------------------------
# Pure-JAX reference of the same semantics (for correctness check)
# ---------------------------------------------------------------------------
def reference_forward(x, p, eps=1e-5):
    def block(h, w, b, gamma, beta, mean, var):
        B, T, _ = h.shape
        hp = jnp.pad(h, ((0, 0), (1, 1), (0, 0)))
        y = (jnp.einsum("btc,cd->btd", hp[:, 0:T, :], w[0])
             + jnp.einsum("btc,cd->btd", hp[:, 1:T + 1, :], w[1])
             + jnp.einsum("btc,cd->btd", hp[:, 2:T + 2, :], w[2]) + b)
        y = (y - mean) / jnp.sqrt(var + eps) * gamma + beta
        y = jnp.maximum(y, 0.0)
        return jnp.max(y.reshape(B, T // 2, 2, -1), axis=2)

    h = block(x, p["w1"], p["b1"], p["bn1_gamma"], p["bn1_beta"], p["bn1_mean"], p["bn1_var"])
    h = block(h, p["w2"], p["b2"], p["bn2_gamma"], p["bn2_beta"], p["bn2_mean"], p["bn2_var"])
    B, S, H = h.shape
    hh = jnp.zeros((B, H), jnp.float32)
    cc = jnp.zeros((B, H), jnp.float32)
    for t in range(S):
        g = h[:, t, :] @ p["wih"] + hh @ p["whh"] + p["bg"]
        i_g = jax.nn.sigmoid(g[:, 0:H])
        f_g = jax.nn.sigmoid(g[:, H:2 * H])
        g_g = jnp.tanh(g[:, 2 * H:3 * H])
        o_g = jax.nn.sigmoid(g[:, 3 * H:4 * H])
        cc = f_g * cc + i_g * g_g
        hh = o_g * jnp.tanh(cc)
    return hh @ p["wfc"] + p["bfc"]


if __name__ == "__main__":
    B, T, F, C = 2, 16, 4, 3      # batch, seq_len, input_size, num_classes
    key = jax.random.PRNGKey(0)
    kx, kp = jax.random.split(key)
    x = jax.random.normal(kx, (B, T, F), dtype=jnp.float32)
    params = init_params(kp, F, C)
    packed = prepare_params(params)            # one-time weight folding / packing

    out = jax.block_until_ready(cnn_lstm_forward(x, packed, C))
    assert out.shape == (B, C), out.shape

    ref = jax.block_until_ready(reference_forward(x, params))
    np.testing.assert_allclose(np.asarray(out), np.asarray(ref), atol=1e-2, rtol=1e-2)
    print("KERNEL_OK")
</pallas_src>

<mosaic_0001>
module attributes {stable_mosaic.version = 11 : i64} {
  func.func @kernel(%arg0: memref<32x12xf32, #tpu.memory_space<vmem>>, %arg1: memref<12x128xf32, #tpu.memory_space<vmem>>, %arg2: memref<1x128xf32, #tpu.memory_space<vmem>>, %arg3: memref<1x128xf32, #tpu.memory_space<vmem>>, %arg4: memref<16x16xf32, #tpu.memory_space<vmem>>, %arg5: memref<16x16xf32, #tpu.memory_space<vmem>>, %arg6: memref<384x64xf32, #tpu.memory_space<vmem>>, %arg7: memref<1x64xf32, #tpu.memory_space<vmem>>, %arg8: memref<1x64xf32, #tpu.memory_space<vmem>>, %arg9: memref<8x16xf32, #tpu.memory_space<vmem>>, %arg10: memref<8x16xf32, #tpu.memory_space<vmem>>, %arg11: memref<64x512xf32, #tpu.memory_space<vmem>>, %arg12: memref<128x512xf32, #tpu.memory_space<vmem>>, %arg13: memref<1x512xf32, #tpu.memory_space<vmem>>, %arg14: memref<128x128xf32, #tpu.memory_space<vmem>>, %arg15: memref<1x128xf32, #tpu.memory_space<vmem>>, %arg16: memref<2x128xf32, #tpu.memory_space<vmem>>) attributes {dimension_semantics = [], scalar_prefetch = 0 : i64, scratch_operands = 0 : i64, tpu.core_type = #tpu.core_type<tc>} {
    %c0 = arith.constant 0 : index
    %c0_0 = arith.constant 0 : index
    %0 = vector.load %arg0[%c0, %c0_0] : memref<32x12xf32, #tpu.memory_space<vmem>>, vector<32x12xf32>
    %c0_1 = arith.constant 0 : index
    %c0_2 = arith.constant 0 : index
    %1 = vector.load %arg1[%c0_1, %c0_2] : memref<12x128xf32, #tpu.memory_space<vmem>>, vector<12x128xf32>
    %cst = arith.constant dense<0.000000e+00> : vector<32x128xf32>
    %2 = tpu.matmul %0, %1, %cst {dimension_numbers = #tpu.dot_dimension_numbers<[1], [0], [0], [1], [0, 0, 1, 1], [], []>} : vector<32x12xf32>, vector<12x128xf32>, vector<32x128xf32> -> vector<32x128xf32>
    %c0_3 = arith.constant 0 : index
    %c0_4 = arith.constant 0 : index
    %3 = vector.load %arg2[%c0_3, %c0_4] : memref<1x128xf32, #tpu.memory_space<vmem>>, vector<1x128xf32>
    %4 = vector.broadcast %3 : vector<1x128xf32> to vector<32x128xf32>
    %5 = arith.mulf %2, %4 : vector<32x128xf32>
    %c0_5 = arith.constant 0 : index
    %c0_6 = arith.constant 0 : index
    %6 = vector.load %arg3[%c0_5, %c0_6] : memref<1x128xf32, #tpu.memory_space<vmem>>, vector<1x128xf32>
    %7 = vector.broadcast %6 : vector<1x128xf32> to vector<32x128xf32>
    %8 = arith.addf %5, %7 : vector<32x128xf32>
    %cst_7 = arith.constant 0.000000e+00 : f32
    %9 = vector.broadcast %cst_7 : f32 to vector<32x128xf32>
    %10 = arith.maximumf %8, %9 : vector<32x128xf32>
    %11 = vector.extract_strided_slice %10 {offsets = [0, 0], sizes = [16, 128], strides = [1, 1]} : vector<32x128xf32> to vector<16x128xf32>
    %12 = vector.extract_strided_slice %10 {offsets = [16, 0], sizes = [16, 128], strides = [1, 1]} : vector<32x128xf32> to vector<16x128xf32>
    %13 = arith.maximumf %11, %12 : vector<16x128xf32>
    %c0_8 = arith.constant 0 : index
    %c0_9 = arith.constant 0 : index
    %14 = vector.load %arg4[%c0_8, %c0_9] : memref<16x16xf32, #tpu.memory_space<vmem>>, vector<16x16xf32>
    %cst_10 = arith.constant dense<0.000000e+00> : vector<16x128xf32>
    %15 = tpu.matmul %14, %13, %cst_10 {dimension_numbers = #tpu.dot_dimension_numbers<[1], [0], [0], [1], [0, 0, 1, 1], [], []>} : vector<16x16xf32>, vector<16x128xf32>, vector<16x128xf32> -> vector<16x128xf32>
    %c0_11 = arith.constant 0 : index
    %c0_12 = arith.constant 0 : index
    %16 = vector.load %arg5[%c0_11, %c0_12] : memref<16x16xf32, #tpu.memory_space<vmem>>, vector<16x16xf32>
    %cst_13 = arith.constant dense<0.000000e+00> : vector<16x128xf32>
    %17 = tpu.matmul %16, %13, %cst_13 {dimension_numbers = #tpu.dot_dimension_numbers<[1], [0], [0], [1], [0, 0, 1, 1], [], []>} : vector<16x16xf32>, vector<16x128xf32>, vector<16x128xf32> -> vector<16x128xf32>
    %18 = tpu.concatenate %15, %13, %17 in 1 : vector<16x128xf32>, vector<16x128xf32>, vector<16x128xf32> -> vector<16x384xf32>
    %c0_14 = arith.constant 0 : index
    %c0_15 = arith.constant 0 : index
    %19 = vector.load %arg6[%c0_14, %c0_15] : memref<384x64xf32, #tpu.memory_space<vmem>>, vector<384x64xf32>
    %cst_16 = arith.constant dense<0.000000e+00> : vector<16x64xf32>
    %20 = tpu.matmul %18, %19, %cst_16 {dimension_numbers = #tpu.dot_dimension_numbers<[1], [0], [0], [1], [0, 0, 1, 1], [], []>} : vector<16x384xf32>, vector<384x64xf32>, vector<16x64xf32> -> vector<16x64xf32>
    %c0_17 = arith.constant 0 : index
    %c0_18 = arith.constant 0 : index
    %21 = vector.load %arg7[%c0_17, %c0_18] : memref<1x64xf32, #tpu.memory_space<vmem>>, vector<1x64xf32>
    %22 = vector.broadcast %21 : vector<1x64xf32> to vector<16x64xf32>
    %23 = arith.mulf %20, %22 : vector<16x64xf32>
    %c0_19 = arith.constant 0 : index
    %c0_20 = arith.constant 0 : index
    %24 = vector.load %arg8[%c0_19, %c0_20] : memref<1x64xf32, #tpu.memory_space<vmem>>, vector<1x64xf32>
    %25 = vector.broadcast %24 : vector<1x64xf32> to vector<16x64xf32>
    %26 = arith.addf %23, %25 : vector<16x64xf32>
    %cst_21 = arith.constant 0.000000e+00 : f32
    %27 = vector.broadcast %cst_21 : f32 to vector<16x64xf32>
    %28 = arith.maximumf %26, %27 : vector<16x64xf32>
    %c0_22 = arith.constant 0 : index
    %c0_23 = arith.constant 0 : index
    %29 = vector.load %arg9[%c0_22, %c0_23] : memref<8x16xf32, #tpu.memory_space<vmem>>, vector<8x16xf32>
    %cst_24 = arith.constant dense<0.000000e+00> : vector<8x64xf32>
    %30 = tpu.matmul %29, %28, %cst_24 {dimension_numbers = #tpu.dot_dimension_numbers<[1], [0], [0], [1], [0, 0, 1, 1], [], []>} : vector<8x16xf32>, vector<16x64xf32>, vector<8x64xf32> -> vector<8x64xf32>
    %c0_25 = arith.constant 0 : index
    %c0_26 = arith.constant 0 : index
    %31 = vector.load %arg10[%c0_25, %c0_26] : memref<8x16xf32, #tpu.memory_space<vmem>>, vector<8x16xf32>
    %cst_27 = arith.constant dense<0.000000e+00> : vector<8x64xf32>
    %32 = tpu.matmul %31, %28, %cst_27 {dimension_numbers = #tpu.dot_dimension_numbers<[1], [0], [0], [1], [0, 0, 1, 1], [], []>} : vector<8x16xf32>, vector<16x64xf32>, vector<8x64xf32> -> vector<8x64xf32>
    %33 = arith.maximumf %30, %32 : vector<8x64xf32>
    %c0_28 = arith.constant 0 : index
    %c0_29 = arith.constant 0 : index
    %34 = vector.load %arg11[%c0_28, %c0_29] : memref<64x512xf32, #tpu.memory_space<vmem>>, vector<64x512xf32>
    %cst_30 = arith.constant dense<0.000000e+00> : vector<8x512xf32>
    %35 = tpu.matmul %33, %34, %cst_30 {dimension_numbers = #tpu.dot_dimension_numbers<[1], [0], [0], [1], [0, 0, 1, 1], [], []>} : vector<8x64xf32>, vector<64x512xf32>, vector<8x512xf32> -> vector<8x512xf32>
    %c0_31 = arith.constant 0 : index
    %c0_32 = arith.constant 0 : index
    %36 = vector.load %arg13[%c0_31, %c0_32] : memref<1x512xf32, #tpu.memory_space<vmem>>, vector<1x512xf32>
    %37 = vector.broadcast %36 : vector<1x512xf32> to vector<8x512xf32>
    %38 = arith.addf %35, %37 : vector<8x512xf32>
    %cst_33 = arith.constant 0.000000e+00 : f32
    %39 = vector.broadcast %cst_33 : f32 to vector<2x128xf32>
    %cst_34 = arith.constant 0.000000e+00 : f32
    %40 = vector.broadcast %cst_34 : f32 to vector<2x128xf32>
    %41 = vector.extract_strided_slice %38 {offsets = [0, 0], sizes = [2, 512], strides = [1, 1]} : vector<8x512xf32> to vector<2x512xf32>
    %c0_35 = arith.constant 0 : index
    %c0_36 = arith.constant 0 : index
    %42 = vector.load %arg12[%c0_35, %c0_36] : memref<128x512xf32, #tpu.memory_space<vmem>>, vector<128x512xf32>
    %cst_37 = arith.constant dense<0.000000e+00> : vector<2x512xf32>
    %43 = tpu.matmul %39, %42, %cst_37 {dimension_numbers = #tpu.dot_dimension_numbers<[1], [0], [0], [1], [0, 0, 1, 1], [], []>} : vector<2x128xf32>, vector<128x512xf32>, vector<2x512xf32> -> vector<2x512xf32>
    %44 = arith.addf %41, %43 : vector<2x512xf32>
    %45 = vector.extract_strided_slice %44 {offsets = [0, 0], sizes = [2, 128], strides = [1, 1]} : vector<2x512xf32> to vector<2x128xf32>
    %46 = arith.negf %45 : vector<2x128xf32>
    %47 = math.exp %46 : vector<2x128xf32>
    %cst_38 = arith.constant 1.000000e+00 : f32
    %48 = vector.broadcast %cst_38 : f32 to vector<2x128xf32>
    %49 = arith.addf %48, %47 : vector<2x128xf32>
    %50 = arith.divf %48, %49 : vector<2x128xf32>
    %51 = vector.extract_strided_slice %44 {offsets = [0, 128], sizes = [2, 128], strides = [1, 1]} : vector<2x512xf32> to vector<2x128xf32>
    %52 = arith.negf %51 : vector<2x128xf32>
    %53 = math.exp %52 : vector<2x128xf32>
    %cst_39 = arith.constant 1.000000e+00 : f32
    %54 = vector.broadcast %cst_39 : f32 to vector<2x128xf32>
    %55 = arith.addf %54, %53 : vector<2x128xf32>
    %56 = arith.divf %54, %55 : vector<2x128xf32>
    %57 = vector.extract_strided_slice %44 {offsets = [0, 256], sizes = [2, 128], strides = [1, 1]} : vector<2x512xf32> to vector<2x128xf32>
    %58 = math.tanh %57 : vector<2x128xf32>
    %59 = vector.extract_strided_slice %44 {offsets = [0, 384], sizes = [2, 128], strides = [1, 1]} : vector<2x512xf32> to vector<2x128xf32>
    %60 = arith.negf %59 : vector<2x128xf32>
    %61 = math.exp %60 : vector<2x128xf32>
    %cst_40 = arith.constant 1.000000e+00 : f32
    %62 = vector.broadcast %cst_40 : f32 to vector<2x128xf32>
    %63 = arith.addf %62, %61 : vector<2x128xf32>
    %64 = arith.divf %62, %63 : vector<2x128xf32>
    %65 = arith.mulf %56, %40 : vector<2x128xf32>
    %66 = arith.mulf %50, %58 : vector<2x128xf32>
    %67 = arith.addf %65, %66 : vector<2x128xf32>
    %68 = math.tanh %67 : vector<2x128xf32>
    %69 = arith.mulf %64, %68 : vector<2x128xf32>
    %70 = vector.extract_strided_slice %38 {offsets = [2, 0], sizes = [2, 512], strides = [1, 1]} : vector<8x512xf32> to vector<2x512xf32>
    %c0_41 = arith.constant 0 : index
    %c0_42 = arith.constant 0 : index
    %71 = vector.load %arg12[%c0_41, %c0_42] : memref<128x512xf32, #tpu.memory_space<vmem>>, vector<128x512xf32>
    %cst_43 = arith.constant dense<0.000000e+00> : vector<2x512xf32>
    %72 = tpu.matmul %69, %71, %cst_43 {dimension_numbers = #tpu.dot_dimension_numbers<[1], [0], [0], [1], [0, 0, 1, 1], [], []>} : vector<2x128xf32>, vector<128x512xf32>, vector<2x512xf32> -> vector<2x512xf32>
    %73 = arith.addf %70, %72 : vector<2x512xf32>
    %74 = vector.extract_strided_slice %73 {offsets = [0, 0], sizes = [2, 128], strides = [1, 1]} : vector<2x512xf32> to vector<2x128xf32>
    %75 = arith.negf %74 : vector<2x128xf32>
    %76 = math.exp %75 : vector<2x128xf32>
    %cst_44 = arith.constant 1.000000e+00 : f32
    %77 = vector.broadcast %cst_44 : f32 to vector<2x128xf32>
    %78 = arith.addf %77, %76 : vector<2x128xf32>
    %79 = arith.divf %77, %78 : vector<2x128xf32>
    %80 = vector.extract_strided_slice %73 {offsets = [0, 128], sizes = [2, 128], strides = [1, 1]} : vector<2x512xf32> to vector<2x128xf32>
    %81 = arith.negf %80 : vector<2x128xf32>
    %82 = math.exp %81 : vector<2x128xf32>
    %cst_45 = arith.constant 1.000000e+00 : f32
    %83 = vector.broadcast %cst_45 : f32 to vector<2x128xf32>
    %84 = arith.addf %83, %82 : vector<2x128xf32>
    %85 = arith.divf %83, %84 : vector<2x128xf32>
    %86 = vector.extract_strided_slice %73 {offsets = [0, 256], sizes = [2, 128], strides = [1, 1]} : vector<2x512xf32> to vector<2x128xf32>
    %87 = math.tanh %86 : vector<2x128xf32>
    %88 = vector.extract_strided_slice %73 {offsets = [0, 384], sizes = [2, 128], strides = [1, 1]} : vector<2x512xf32> to vector<2x128xf32>
    %89 = arith.negf %88 : vector<2x128xf32>
    %90 = math.exp %89 : vector<2x128xf32>
    %cst_46 = arith.constant 1.000000e+00 : f32
    %91 = vector.broadcast %cst_46 : f32 to vector<2x128xf32>
    %92 = arith.addf %91, %90 : vector<2x128xf32>
    %93 = arith.divf %91, %92 : vector<2x128xf32>
    %94 = arith.mulf %85, %67 : vector<2x128xf32>
    %95 = arith.mulf %79, %87 : vector<2x128xf32>
    %96 = arith.addf %94, %95 : vector<2x128xf32>
    %97 = math.tanh %96 : vector<2x128xf32>
    %98 = arith.mulf %93, %97 : vector<2x128xf32>
    %99 = vector.extract_strided_slice %38 {offsets = [4, 0], sizes = [2, 512], strides = [1, 1]} : vector<8x512xf32> to vector<2x512xf32>
    %c0_47 = arith.constant 0 : index
    %c0_48 = arith.constant 0 : index
    %100 = vector.load %arg12[%c0_47, %c0_48] : memref<128x512xf32, #tpu.memory_space<vmem>>, vector<128x512xf32>
    %cst_49 = arith.constant dense<0.000000e+00> : vector<2x512xf32>
    %101 = tpu.matmul %98, %100, %cst_49 {dimension_numbers = #tpu.dot_dimension_numbers<[1], [0], [0], [1], [0, 0, 1, 1], [], []>} : vector<2x128xf32>, vector<128x512xf32>, vector<2x512xf32> -> vector<2x512xf32>
    %102 = arith.addf %99, %101 : vector<2x512xf32>
    %103 = vector.extract_strided_slice %102 {offsets = [0, 0], sizes = [2, 128], strides = [1, 1]} : vector<2x512xf32> to vector<2x128xf32>
    %104 = arith.negf %103 : vector<2x128xf32>
    %105 = math.exp %104 : vector<2x128xf32>
    %cst_50 = arith.constant 1.000000e+00 : f32
    %106 = vector.broadcast %cst_50 : f32 to vector<2x128xf32>
    %107 = arith.addf %106, %105 : vector<2x128xf32>
    %108 = arith.divf %106, %107 : vector<2x128xf32>
    %109 = vector.extract_strided_slice %102 {offsets = [0, 128], sizes = [2, 128], strides = [1, 1]} : vector<2x512xf32> to vector<2x128xf32>
    %110 = arith.negf %109 : vector<2x128xf32>
    %111 = math.exp %110 : vector<2x128xf32>
    %cst_51 = arith.constant 1.000000e+00 : f32
    %112 = vector.broadcast %cst_51 : f32 to vector<2x128xf32>
    %113 = arith.addf %112, %111 : vector<2x128xf32>
    %114 = arith.divf %112, %113 : vector<2x128xf32>
    %115 = vector.extract_strided_slice %102 {offsets = [0, 256], sizes = [2, 128], strides = [1, 1]} : vector<2x512xf32> to vector<2x128xf32>
    %116 = math.tanh %115 : vector<2x128xf32>
    %117 = vector.extract_strided_slice %102 {offsets = [0, 384], sizes = [2, 128], strides = [1, 1]} : vector<2x512xf32> to vector<2x128xf32>
    %118 = arith.negf %117 : vector<2x128xf32>
    %119 = math.exp %118 : vector<2x128xf32>
    %cst_52 = arith.constant 1.000000e+00 : f32
    %120 = vector.broadcast %cst_52 : f32 to vector<2x128xf32>
    %121 = arith.addf %120, %119 : vector<2x128xf32>
    %122 = arith.divf %120, %121 : vector<2x128xf32>
    %123 = arith.mulf %114, %96 : vector<2x128xf32>
    %124 = arith.mulf %108, %116 : vector<2x128xf32>
    %125 = arith.addf %123, %124 : vector<2x128xf32>
    %126 = math.tanh %125 : vector<2x128xf32>
    %127 = arith.mulf %122, %126 : vector<2x128xf32>
    %128 = vector.extract_strided_slice %38 {offsets = [6, 0], sizes = [2, 512], strides = [1, 1]} : vector<8x512xf32> to vector<2x512xf32>
    %c0_53 = arith.constant 0 : index
    %c0_54 = arith.constant 0 : index
    %129 = vector.load %arg12[%c0_53, %c0_54] : memref<128x512xf32, #tpu.memory_space<vmem>>, vector<128x512xf32>
    %cst_55 = arith.constant dense<0.000000e+00> : vector<2x512xf32>
    %130 = tpu.matmul %127, %129, %cst_55 {dimension_numbers = #tpu.dot_dimension_numbers<[1], [0], [0], [1], [0, 0, 1, 1], [], []>} : vector<2x128xf32>, vector<128x512xf32>, vector<2x512xf32> -> vector<2x512xf32>
    %131 = arith.addf %128, %130 : vector<2x512xf32>
    %132 = vector.extract_strided_slice %131 {offsets = [0, 0], sizes = [2, 128], strides = [1, 1]} : vector<2x512xf32> to vector<2x128xf32>
    %133 = arith.negf %132 : vector<2x128xf32>
    %134 = math.exp %133 : vector<2x128xf32>
    %cst_56 = arith.constant 1.000000e+00 : f32
    %135 = vector.broadcast %cst_56 : f32 to vector<2x128xf32>
    %136 = arith.addf %135, %134 : vector<2x128xf32>
    %137 = arith.divf %135, %136 : vector<2x128xf32>
    %138 = vector.extract_strided_slice %131 {offsets = [0, 128], sizes = [2, 128], strides = [1, 1]} : vector<2x512xf32> to vector<2x128xf32>
    %139 = arith.negf %138 : vector<2x128xf32>
    %140 = math.exp %139 : vector<2x128xf32>
    %cst_57 = arith.constant 1.000000e+00 : f32
    %141 = vector.broadcast %cst_57 : f32 to vector<2x128xf32>
    %142 = arith.addf %141, %140 : vector<2x128xf32>
    %143 = arith.divf %141, %142 : vector<2x128xf32>
    %144 = vector.extract_strided_slice %131 {offsets = [0, 256], sizes = [2, 128], strides = [1, 1]} : vector<2x512xf32> to vector<2x128xf32>
    %145 = math.tanh %144 : vector<2x128xf32>
    %146 = vector.extract_strided_slice %131 {offsets = [0, 384], sizes = [2, 128], strides = [1, 1]} : vector<2x512xf32> to vector<2x128xf32>
    %147 = arith.negf %146 : vector<2x128xf32>
    %148 = math.exp %147 : vector<2x128xf32>
    %cst_58 = arith.constant 1.000000e+00 : f32
    %149 = vector.broadcast %cst_58 : f32 to vector<2x128xf32>
    %150 = arith.addf %149, %148 : vector<2x128xf32>
    %151 = arith.divf %149, %150 : vector<2x128xf32>
    %152 = arith.mulf %143, %125 : vector<2x128xf32>
    %153 = arith.mulf %137, %145 : vector<2x128xf32>
    %154 = arith.addf %152, %153 : vector<2x128xf32>
    %155 = math.tanh %154 : vector<2x128xf32>
    %156 = arith.mulf %151, %155 : vector<2x128xf32>
    %c0_59 = arith.constant 0 : index
    %c0_60 = arith.constant 0 : index
    %157 = vector.load %arg14[%c0_59, %c0_60] : memref<128x128xf32, #tpu.memory_space<vmem>>, vector<128x128xf32>
    %cst_61 = arith.constant dense<0.000000e+00> : vector<2x128xf32>
    %158 = tpu.matmul %156, %157, %cst_61 {dimension_numbers = #tpu.dot_dimension_numbers<[1], [0], [0], [1], [0, 0, 1, 1], [], []>} : vector<2x128xf32>, vector<128x128xf32>, vector<2x128xf32> -> vector<2x128xf32>
    %c0_62 = arith.constant 0 : index
    %c0_63 = arith.constant 0 : index
    %159 = vector.load %arg15[%c0_62, %c0_63] : memref<1x128xf32, #tpu.memory_space<vmem>>, vector<1x128xf32>
    %160 = vector.broadcast %159 : vector<1x128xf32> to vector<2x128xf32>
    %161 = arith.addf %158, %160 : vector<2x128xf32>
    %c0_64 = arith.constant 0 : index
    %c0_65 = arith.constant 0 : index
    %162 = vector.load %arg16[%c0_64, %c0_65] : memref<2x128xf32, #tpu.memory_space<vmem>>, vector<2x128xf32>
    tpu.vector_store %arg16[%c0_64, %c0_65], %161 {strides = array<i32>} : memref<2x128xf32, #tpu.memory_space<vmem>>, vector<2x128xf32>,
    return
  }
}

</mosaic_0001>

<llo_original>
// kernel: cnn_lstm_forward.1
$region0: #{cnn_lstm_forward.1}
  #allocation0 [shape = 'u32[]', space=smem, size = 0x4, offset = 0x4, fixed_abs, tag = 'smem constant byte address 0x4 - core index']
  #allocation1 [shape = 'u32[144,128]{1,0:T(1,128)}', space=vmem, size = 0x12000, scoped, tag = 'internal scratch']
  %s0 = inlined_call_operand.vmem [shape: f32[32,12], index: 0, kind: input, shape index: {}]
  %s1 = inlined_call_operand.vmem [shape: f32[12,128], index: 1, kind: input, shape index: {}]
  %s2 = inlined_call_operand.vmem [shape: f32[1,128], index: 2, kind: input, shape index: {}]
  %s3 = inlined_call_operand.vmem [shape: f32[1,128], index: 3, kind: input, shape index: {}]
  %s4 = inlined_call_operand.vmem [shape: f32[16,16], index: 4, kind: input, shape index: {}]
  %s5 = inlined_call_operand.vmem [shape: f32[16,16], index: 5, kind: input, shape index: {}]
  %s6 = inlined_call_operand.vmem [shape: f32[384,64], index: 6, kind: input, shape index: {}]
  %s7 = inlined_call_operand.vmem [shape: f32[1,64], index: 7, kind: input, shape index: {}]
  %s8 = inlined_call_operand.vmem [shape: f32[1,64], index: 8, kind: input, shape index: {}]
  %s9 = inlined_call_operand.vmem [shape: f32[8,16], index: 9, kind: input, shape index: {}]
  %s10 = inlined_call_operand.vmem [shape: f32[8,16], index: 10, kind: input, shape index: {}]
  %s11 = inlined_call_operand.vmem [shape: f32[64,512], index: 11, kind: input, shape index: {}]
  %s12 = inlined_call_operand.vmem [shape: f32[128,512], index: 12, kind: input, shape index: {}]
  %s13 = inlined_call_operand.vmem [shape: f32[1,512], index: 13, kind: input, shape index: {}]
  %s14 = inlined_call_operand.vmem [shape: f32[128,128], index: 14, kind: input, shape index: {}]
  %s15 = inlined_call_operand.vmem [shape: f32[1,128], index: 15, kind: input, shape index: {}]
  %s16 = inlined_call_operand.hbm [shape: f32[2,128], index: 16, kind: output, shape index: {}]
  %s17 = sld [smem:[#allocation0]]
  $region74: #{cnn_lstm_forward.1} parent=0
    _
  %s19 = ssub.s32 1, %s17
  %s20 = scalar_select 0, %s19, %s17
  $region1: #{cnn_lstm_forward.1} parent=0
    #allocation2 [shape = 'u8[1024]{0}', space=vmem, size = 0x400, scoped, tag = 'output window, operand 0, single buffered']
    #allocation3 [shape = 's32[1]{0}', space=sflag, size = 0x4, scoped, tag = 'scoped memory for cnn_lstm_forward.1']
    %21 = vsyncpa [#allocation3], 0
    // Predicated region
    $region2: #{cnn_lstm_forward.1} parent=1 // pred_check
      _
    $region3: #{cnn_lstm_forward.1} parent=1 // pred_check_branch
      %23 = sbr.rel (0) target = $region5
    $region4: #{cnn_lstm_forward.1} parent=1 // pred_region
      _
    $region5: #{cnn_lstm_forward.1} parent=1 // pred_fallthru
      _
    // Predicated region
    $region6: #{cnn_lstm_forward.1} parent=1 // pred_check
      _
    $region7: #{cnn_lstm_forward.1} parent=1 // pred_check_branch
      %25 = sbr.rel (0) target = $region9
    $region8: #{cnn_lstm_forward.1} parent=1 // pred_region
      _
    $region9: #{cnn_lstm_forward.1} parent=1 // pred_fallthru
      _
    // Predicated region
    $region10: #{cnn_lstm_forward.1} parent=1 // pred_check
      _
    $region11: #{cnn_lstm_forward.1} parent=1 // pred_check_branch
      %27 = sbr.rel (0) target = $region13
    $region12: #{cnn_lstm_forward.1} parent=1 // pred_region
      _
    $region13: #{cnn_lstm_forward.1} parent=1 // pred_fallthru
      _
    // Predicated region
    $region14: #{cnn_lstm_forward.1} parent=1 // pred_check
      _
    $region15: #{cnn_lstm_forward.1} parent=1 // pred_check_branch
      %29 = sbr.rel (0) target = $region17
    $region16: #{cnn_lstm_forward.1} parent=1 // pred_region
      _
    $region17: #{cnn_lstm_forward.1} parent=1 // pred_fallthru
      _
    // Predicated region
    $region18: #{cnn_lstm_forward.1} parent=1 // pred_check
      _
    $region19: #{cnn_lstm_forward.1} parent=1 // pred_check_branch
      %31 = sbr.rel (0) target = $region21
    $region20: #{cnn_lstm_forward.1} parent=1 // pred_region
      _
    $region21: #{cnn_lstm_forward.1} parent=1 // pred_fallthru
      _
    // Predicated region
    $region22: #{cnn_lstm_forward.1} parent=1 // pred_check
      _
    $region23: #{cnn_lstm_forward.1} parent=1 // pred_check_branch
      %33 = sbr.rel (0) target = $region25
    $region24: #{cnn_lstm_forward.1} parent=1 // pred_region
      _
    $region25: #{cnn_lstm_forward.1} parent=1 // pred_fallthru
      _
    // Predicated region
    $region26: #{cnn_lstm_forward.1} parent=1 // pred_check
      _
    $region27: #{cnn_lstm_forward.1} parent=1 // pred_check_branch
      %35 = sbr.rel (0) target = $region29
    $region28: #{cnn_lstm_forward.1} parent=1 // pred_region
      _
    $region29: #{cnn_lstm_forward.1} parent=1 // pred_fallthru
      _
    // Predicated region
    $region30: #{cnn_lstm_forward.1} parent=1 // pred_check
      _
    $region31: #{cnn_lstm_forward.1} parent=1 // pred_check_branch
      %37 = sbr.rel (0) target = $region33
    $region32: #{cnn_lstm_forward.1} parent=1 // pred_region
      _
    $region33: #{cnn_lstm_forward.1} parent=1 // pred_fallthru
      _
    // Predicated region
    $region34: #{cnn_lstm_forward.1} parent=1 // pred_check
      _
    $region35: #{cnn_lstm_forward.1} parent=1 // pred_check_branch
      %39 = sbr.rel (0) target = $region37
    $region36: #{cnn_lstm_forward.1} parent=1 // pred_region
      _
    $region37: #{cnn_lstm_forward.1} parent=1 // pred_fallthru
      _
    // Predicated region
    $region38: #{cnn_lstm_forward.1} parent=1 // pred_check
      _
    $region39: #{cnn_lstm_forward.1} parent=1 // pred_check_branch
      %41 = sbr.rel (0) target = $region41
    $region40: #{cnn_lstm_forward.1} parent=1 // pred_region
      _
    $region41: #{cnn_lstm_forward.1} parent=1 // pred_fallthru
      _
    // Predicated region
    $region42: #{cnn_lstm_forward.1} parent=1 // pred_check
      _
    $region43: #{cnn_lstm_forward.1} parent=1 // pred_check_branch
      %43 = sbr.rel (0) target = $region45
    $region44: #{cnn_lstm_forward.1} parent=1 // pred_region
      _
    $region45: #{cnn_lstm_forward.1} parent=1 // pred_fallthru
      _
    // Predicated region
    $region46: #{cnn_lstm_forward.1} parent=1 // pred_check
      _
    $region47: #{cnn_lstm_forward.1} parent=1 // pred_check_branch
      %45 = sbr.rel (0) target = $region49
    $region48: #{cnn_lstm_forward.1} parent=1 // pred_region
      _
    $region49: #{cnn_lstm_forward.1} parent=1 // pred_fallthru
      _
    // Predicated region
    $region50: #{cnn_lstm_forward.1} parent=1 // pred_check
      _
    $region51: #{cnn_lstm_forward.1} parent=1 // pred_check_branch
      %47 = sbr.rel (0) target = $region53
    $region52: #{cnn_lstm_forward.1} parent=1 // pred_region
      _
    $region53: #{cnn_lstm_forward.1} parent=1 // pred_fallthru
      _
    // Predicated region
    $region54: #{cnn_lstm_forward.1} parent=1 // pred_check
      _
    $region55: #{cnn_lstm_forward.1} parent=1 // pred_check_branch
      %49 = sbr.rel (0) target = $region57
    $region56: #{cnn_lstm_forward.1} parent=1 // pred_region
      _
    $region57: #{cnn_lstm_forward.1} parent=1 // pred_fallthru
      _
    // Predicated region
    $region58: #{cnn_lstm_forward.1} parent=1 // pred_check
      _
    $region59: #{cnn_lstm_forward.1} parent=1 // pred_check_branch
      %51 = sbr.rel (0) target = $region61
    $region60: #{cnn_lstm_forward.1} parent=1 // pred_region
      _
    $region61: #{cnn_lstm_forward.1} parent=1 // pred_fallthru
      _
    // Predicated region
    $region62: #{cnn_lstm_forward.1} parent=1 // pred_check
      _
    $region63: #{cnn_lstm_forward.1} parent=1 // pred_check_branch
      %53 = sbr.rel (0) target = $region65
    $region64: #{cnn_lstm_forward.1} parent=1 // pred_region
      _
    $region65: #{cnn_lstm_forward.1} parent=1 // pred_fallthru
      _
    %v54 = vld [vmem:[%s0] sm:$0xff]
    %v55 = vld [vmem:[%s0 + $0x8] sm:$0xff]
    %v56 = vld [vmem:[%s0 + $0x10] sm:$0xff]
    %v57 = vld [vmem:[%s0 + $0x18] sm:$0xff]
    %v58 = vld [vmem:[%s1] sm:$0xff]
    %v59 = vld [vmem:[%s1 + $0x8] sm:$0xf]
    %vm60 = vcmask 97280
    %v62 = vsel %vm60, %v54, 0
    %v65 = vsel %vm60, %v55, 0
    %v68 = vsel %vm60, %v56, 0
    %v71 = vsel %vm60, %v57, 0
    %vm73 = vcmask 1043456
    %v75 = vsel %vm73, %v59, 0
    %77 = vmatprep.subr.mxu0 0.0
    %78 = vmatpush1.msra.mxu0 %v58
    %79 = vmatprep.subr.mxu0 0.0
    %80 = vmatpush1.msra.mxu0 %v75
    %81 = vmatprep.subr.mxu0 0.0
    %82 = vmatpush1.msra.mxu0 0.0
    %83 = vmatprep.subr.mxu0 0.0
    %84 = vmatpush1.msra.mxu0 0.0
    %85 = vmatprep.subr.mxu0 0.0
    %86 = vmatpush1.msra.mxu0 0.0
    %87 = vmatprep.subr.mxu0 0.0
    %88 = vmatpush1.msra.mxu0 0.0
    %89 = vmatprep.subr.mxu0 0.0
    %90 = vmatpush1.msra.mxu0 0.0
    %91 = vmatprep.subr.mxu0 0.0
    %92 = vmatpush1.msra.mxu0 0.0
    %93 = vmatprep.subr.mxu0 0.0
    %94 = vmatpush1.msra.mxu0 0.0
    %95 = vmatprep.subr.mxu0 0.0
    %96 = vmatpush1.msra.mxu0 0.0
    %97 = vmatprep.subr.mxu0 0.0
    %98 = vmatpush1.msra.mxu0 0.0
    %99 = vmatprep.subr.mxu0 0.0
    %100 = vmatpush1.msra.mxu0 0.0
    %101 = vmatprep.subr.mxu0 0.0
    %102 = vmatpush1.msra.mxu0 0.0
    %103 = vmatprep.subr.mxu0 0.0
    %104 = vmatpush1.msra.mxu0 0.0
    %105 = vmatprep.subr.mxu0 0.0
    %106 = vmatpush1.msra.mxu0 0.0
    %107 = vmatprep.subr.mxu0 0.0
    %108 = vmatpush1.msra.mxu0 0.0
    %109 = vmatprep.subr.mxu0 0.0
    %110 = vmatpush1.msra.mxu0 0.0
    %111 = vmatprep.subr.mxu0 0.0
    %112 = vmatpush1.msra.mxu0 0.0
    %113 = vmatprep.subr.mxu0 0.0
    %114 = vmatpush1.msra.mxu0 0.0
    %115 = vmatprep.subr.mxu0 0.0
    %116 = vmatpush1.msra.mxu0 0.0
    %117 = vmatprep.subr.mxu0 0.0
    %118 = vmatpush1.msra.mxu0 0.0
    %119 = vmatprep.subr.mxu0 0.0
    %120 = vmatpush1.msra.mxu0 0.0
    %121 = vmatprep.subr.mxu0 0.0
    %122 = vmatpush1.msra.mxu0 0.0
    %123 = vmatprep.subr.mxu0 0.0
    %124 = vmatpush1.msra.mxu0 0.0
    %125 = vmatprep.subr.mxu0 0.0
    %126 = vmatpush1.msra.mxu0 0.0
    %127 = vmatprep.subr.mxu0 0.0
    %128 = vmatpush1.msra.mxu0 0.0
    %129 = vmatprep.subr.mxu0 0.0
    %130 = vmatpush1.msra.mxu0 0.0
    %131 = vmatprep.subr.mxu0 0.0
    %132 = vmatpush1.msra.mxu0 0.0
    %133 = vmatprep.subr.mxu0 0.0
    %134 = vmatpush1.msra.mxu0 0.0
    %135 = vmatprep.subr.mxu0 0.0
    %136 = vmatpush1.msra.mxu0 0.0
    %137 = vmatprep.subr.mxu0 0.0
    %138 = vmatpush1.msra.mxu0 0.0
    %139 = vmatprep.subr.mxu0 0.0
    %140 = vmatpush1.msra.mxu0 0.0
    %141 = vmatprep.mubr.f32.mxu0 0.0
    %142 = vmatmul.mubr.f32.gmra.mrb[0].mxu0 %v62
    %v143 = vpop.f32.mrb[0].mxu0
    %v144 = vadd.f32 0.0, %v143
    %v145 = vpop.f32.mrb[0].mxu0
    %146 = vmatprep.mubr.f32.mxu0 0.0
    %147 = vmatmul.mubr.f32.gmra.mrb[0].mxu0 %v65
    %v148 = vpop.f32.mrb[0].mxu0
    %v149 = vadd.f32 0.0, %v148
    %v150 = vpop.f32.mrb[0].mxu0
    %151 = vmatprep.mubr.f32.mxu0 0.0
    %152 = vmatmul.mubr.f32.gmra.mrb[0].mxu0 %v68
    %v153 = vpop.f32.mrb[0].mxu0
    %v154 = vadd.f32 0.0, %v153
    %v155 = vpop.f32.mrb[0].mxu0
    %156 = vmatprep.mubr.f32.mxu0 0.0
    %157 = vmatmul.mubr.f32.gmra.mrb[0].mxu0 %v71
    %v158 = vpop.f32.mrb[0].mxu0
    %v159 = vadd.f32 0.0, %v158
    %v160 = vpop.f32.mrb[0].mxu0
    %161 = vdwg.mxu0
    %v162 = vld [vmem:[%s2] sm:$0x1]
    %v164 = vlaneseq
    %v165 = vshrl.u32 %v164, 7
    %v166 = vsub.s32 0, %v165
    %v167 = vrot.slane %v162, %v166
    %v169 = vmul.f32 %v144, %v167
    %v170 = vmul.f32 %v149, %v167
    %v171 = vmul.f32 %v154, %v167
    %v172 = vmul.f32 %v159, %v167
    %v173 = vld [vmem:[%s3] sm:$0x1]
    %v175 = vlaneseq
    %v176 = vshrl.u32 %v175, 7
    %v177 = vsub.s32 0, %v176
    %v178 = vrot.slane %v173, %v177
    %v180 = vadd.f32 %v169, %v178
    %v181 = vadd.f32 %v170, %v178
    %v182 = vadd.f32 %v171, %v178
    %v183 = vadd.f32 %v172, %v178
    %v184 = vmax.f32 %v180, 0.0
    %v185 = vmax.f32 %v181, 0.0
    %v186 = vmax.f32 %v182, 0.0
    %v187 = vmax.f32 %v183, 0.0
    %v188 = vmax.f32 %v184, %v186
    %v189 = vmax.f32 %v185, %v187
    %v190 = vld [vmem:[%s4] sm:$0xff]
    %v191 = vld [vmem:[%s4 + $0x8] sm:$0xff]
    %vm192 = vcmask 130048
    %v194 = vsel %vm192, %v190, 0
    %v197 = vsel %vm192, %v191, 0
    %199 = vmatprep.subr.mxu0 0.0
    %200 = vmatpush1.msra.mxu0 %v188
    %201 = vmatprep.subr.mxu0 0.0
    %202 = vmatpush1.msra.mxu0 %v189
    %203 = vmatprep.subr.mxu0 0.0
    %204 = vmatpush1.msra.mxu0 0.0
    %205 = vmatprep.subr.mxu0 0.0
    %206 = vmatpush1.msra.mxu0 0.0
    %207 = vmatprep.subr.mxu0 0.0
    %208 = vmatpush1.msra.mxu0 0.0
    %209 = vmatprep.subr.mxu0 0.0
    %210 = vmatpush1.msra.mxu0 0.0
    %211 = vmatprep.subr.mxu0 0.0
    %212 = vmatpush1.msra.mxu0 0.0
    %213 = vmatprep.subr.mxu0 0.0
    %214 = vmatpush1.msra.mxu0 0.0
    %215 = vmatprep.subr.mxu0 0.0
    %216 = vmatpush1.msra.mxu0 0.0
    %217 = vmatprep.subr.mxu0 0.0
    %218 = vmatpush1.msra.mxu0 0.0
    %219 = vmatprep.subr.mxu0 0.0
    %220 = vmatpush1.msra.mxu0 0.0
    %221 = vmatprep.subr.mxu0 0.0
    %222 = vmatpush1.msra.mxu0 0.0
    %223 = vmatprep.subr.mxu0 0.0
    %224 = vmatpush1.msra.mxu0 0.0
    %225 = vmatprep.subr.mxu0 0.0
    %226 = vmatpush1.msra.mxu0 0.0
    %227 = vmatprep.subr.mxu0 0.0
    %228 = vmatpush1.msra.mxu0 0.0
    %229 = vmatprep.subr.mxu0 0.0
    %230 = vmatpush1.msra.mxu0 0.0
    %231 = vmatprep.subr.mxu0 0.0
    %232 = vmatpush1.msra.mxu0 0.0
    %233 = vmatprep.subr.mxu0 0.0
    %234 = vmatpush1.msra.mxu0 0.0
    %235 = vmatprep.subr.mxu0 0.0
    %236 = vmatpush1.msra.mxu0 0.0
    %237 = vmatprep.subr.mxu0 0.0
    %238 = vmatpush1.msra.mxu0 0.0
    %239 = vmatprep.subr.mxu0 0.0
    %240 = vmatpush1.msra.mxu0 0.0
    %241 = vmatprep.subr.mxu0 0.0
    %242 = vmatpush1.msra.mxu0 0.0
    %243 = vmatprep.subr.mxu0 0.0
    %244 = vmatpush1.msra.mxu0 0.0
    %245 = vmatprep.subr.mxu0 0.0
    %246 = vmatpush1.msra.mxu0 0.0
    %247 = vmatprep.subr.mxu0 0.0
    %248 = vmatpush1.msra.mxu0 0.0
    %249 = vmatprep.subr.mxu0 0.0
    %250 = vmatpush1.msra.mxu0 0.0
    %251 = vmatprep.subr.mxu0 0.0
    %252 = vmatpush1.msra.mxu0 0.0
    %253 = vmatprep.subr.mxu0 0.0
    %254 = vmatpush1.msra.mxu0 0.0
    %255 = vmatprep.subr.mxu0 0.0
    %256 = vmatpush1.msra.mxu0 0.0
    %257 = vmatprep.subr.mxu0 0.0
    %258 = vmatpush1.msra.mxu0 0.0
    %259 = vmatprep.subr.mxu0 0.0
    %260 = vmatpush1.msra.mxu0 0.0
    %261 = vmatprep.subr.mxu0 0.0
    %262 = vmatpush1.msra.mxu0 0.0
    %263 = vmatprep.mubr.f32.mxu0 0.0
    %264 = vmatmul.mubr.f32.gmra.mrb[0].mxu0 %v194
    %v265 = vpop.f32.mrb[0].mxu0
    %v266 = vadd.f32 0.0, %v265
    %v267 = vpop.f32.mrb[0].mxu0
    %268 = vmatprep.mubr.f32.mxu0 0.0
    %269 = vmatmul.mubr.f32.gmra.mrb[0].mxu0 %v197
    %v270 = vpop.f32.mrb[0].mxu0
    %v271 = vadd.f32 0.0, %v270
    %v272 = vpop.f32.mrb[0].mxu0
    %273 = vdwg.mxu0
    %v274 = vld [vmem:[%s5] sm:$0xff]
    %v275 = vld [vmem:[%s5 + $0x8] sm:$0xff]
    %v277 = vsel %vm192, %v274, 0
    %v280 = vsel %vm192, %v275, 0
    %282 = vmatprep.subr.mxu0 0.0
    %283 = vmatpush1.msra.mxu0 %v188
    %284 = vmatprep.subr.mxu0 0.0
    %285 = vmatpush1.msra.mxu0 %v189
    %286 = vmatprep.subr.mxu0 0.0
    %287 = vmatpush1.msra.mxu0 0.0
    %288 = vmatprep.subr.mxu0 0.0
    %289 = vmatpush1.msra.mxu0 0.0
    %290 = vmatprep.subr.mxu0 0.0
    %291 = vmatpush1.msra.mxu0 0.0
    %292 = vmatprep.subr.mxu0 0.0
    %293 = vmatpush1.msra.mxu0 0.0
    %294 = vmatprep.subr.mxu0 0.0
    %295 = vmatpush1.msra.mxu0 0.0
    %296 = vmatprep.subr.mxu0 0.0
    %297 = vmatpush1.msra.mxu0 0.0
    %298 = vmatprep.subr.mxu0 0.0
    %299 = vmatpush1.msra.mxu0 0.0
    %300 = vmatprep.subr.mxu0 0.0
    %301 = vmatpush1.msra.mxu0 0.0
    %302 = vmatprep.subr.mxu0 0.0
    %303 = vmatpush1.msra.mxu0 0.0
    %304 = vmatprep.subr.mxu0 0.0
    %305 = vmatpush1.msra.mxu0 0.0
    %306 = vmatprep.subr.mxu0 0.0
    %307 = vmatpush1.msra.mxu0 0.0
    %308 = vmatprep.subr.mxu0 0.0
    %309 = vmatpush1.msra.mxu0 0.0
    %310 = vmatprep.subr.mxu0 0.0
    %311 = vmatpush1.msra.mxu0 0.0
    %312 = vmatprep.subr.mxu0 0.0
    %313 = vmatpush1.msra.mxu0 0.0
    %314 = vmatprep.subr.mxu0 0.0
    %315 = vmatpush1.msra.mxu0 0.0
    %316 = vmatprep.subr.mxu0 0.0
    %317 = vmatpush1.msra.mxu0 0.0
    %318 = vmatprep.subr.mxu0 0.0
    %319 = vmatpush1.msra.mxu0 0.0
    %320 = vmatprep.subr.mxu0 0.0
    %321 = vmatpush1.msra.mxu0 0.0
    %322 = vmatprep.subr.mxu0 0.0
    %323 = vmatpush1.msra.mxu0 0.0
    %324 = vmatprep.subr.mxu0 0.0
    %325 = vmatpush1.msra.mxu0 0.0
    %326 = vmatprep.subr.mxu0 0.0
    %327 = vmatpush1.msra.mxu0 0.0
    %328 = vmatprep.subr.mxu0 0.0
    %329 = vmatpush1.msra.mxu0 0.0
    %330 = vmatprep.subr.mxu0 0.0
    %331 = vmatpush1.msra.mxu0 0.0
    %332 = vmatprep.subr.mxu0 0.0
    %333 = vmatpush1.msra.mxu0 0.0
    %334 = vmatprep.subr.mxu0 0.0
    %335 = vmatpush1.msra.mxu0 0.0
    %336 = vmatprep.subr.mxu0 0.0
    %337 = vmatpush1.msra.mxu0 0.0
    %338 = vmatprep.subr.mxu0 0.0
    %339 = vmatpush1.msra.mxu0 0.0
    %340 = vmatprep.subr.mxu0 0.0
    %341 = vmatpush1.msra.mxu0 0.0
    %342 = vmatprep.subr.mxu0 0.0
    %343 = vmatpush1.msra.mxu0 0.0
    %344 = vmatprep.subr.mxu0 0.0
    %345 = vmatpush1.msra.mxu0 0.0
    %346 = vmatprep.mubr.f32.mxu0 0.0
    %347 = vmatmul.mubr.f32.gmra.mrb[0].mxu0 %v277
    %v348 = vpop.f32.mrb[0].mxu0
    %v349 = vadd.f32 0.0, %v348
    %v350 = vpop.f32.mrb[0].mxu0
    %351 = vmatprep.mubr.f32.mxu0 0.0
    %352 = vmatmul.mubr.f32.gmra.mrb[0].mxu0 %v280
    %v353 = vpop.f32.mrb[0].mxu0
    %v354 = vadd.f32 0.0, %v353
    %v355 = vpop.f32.mrb[0].mxu0
    %356 = vdwg.mxu0
    %v357 = vld [vmem:[%s6] sm:$0xff]
    %v358 = vld [vmem:[%s6 + $0x8] sm:$0xff]
    %v359 = vld [vmem:[%s6 + $0x10] sm:$0xff]
    %v360 = vld [vmem:[%s6 + $0x18] sm:$0xff]
    %v361 = vld [vmem:[%s6 + $0x20] sm:$0xff]
    %v362 = vld [vmem:[%s6 + $0x28] sm:$0xff]
    %v363 = vld [vmem:[%s6 + $0x30] sm:$0xff]
    %v364 = vld [vmem:[%s6 + $0x38] sm:$0xff]
    %v365 = vld [vmem:[%s6 + $0x40] sm:$0xff]
    %v366 = vld [vmem:[%s6 + $0x48] sm:$0xff]
    %v367 = vld [vmem:[%s6 + $0x50] sm:$0xff]
    %v368 = vld [vmem:[%s6 + $0x58] sm:$0xff]
    %v369 = vld [vmem:[%s6 + $0x60] sm:$0xff]
    %v370 = vld [vmem:[%s6 + $0x68] sm:$0xff]
    %v371 = vld [vmem:[%s6 + $0x70] sm:$0xff]
    %v372 = vld [vmem:[%s6 + $0x78] sm:$0xff]
    %v373 = vld [vmem:[%s6 + $0x80] sm:$0xff]
    %v374 = vld [vmem:[%s6 + $0x88] sm:$0xff]
    %v375 = vld [vmem:[%s6 + $0x90] sm:$0xff]
    %v376 = vld [vmem:[%s6 + $0x98] sm:$0xff]
    %v377 = vld [vmem:[%s6 + $0xa0] sm:$0xff]
    %v378 = vld [vmem:[%s6 + $0xa8] sm:$0xff]
    %v379 = vld [vmem:[%s6 + $0xb0] sm:$0xff]
    %v380 = vld [vmem:[%s6 + $0xb8] sm:$0xff]
    %v381 = vld [vmem:[%s6 + $0xc0] sm:$0xff]
    %v382 = vld [vmem:[%s6 + $0xc8] sm:$0xff]
    %v383 = vld [vmem:[%s6 + $0xd0] sm:$0xff]
    %v384 = vld [vmem:[%s6 + $0xd8] sm:$0xff]
    %v385 = vld [vmem:[%s6 + $0xe0] sm:$0xff]
    %v386 = vld [vmem:[%s6 + $0xe8] sm:$0xff]
    %v387 = vld [vmem:[%s6 + $0xf0] sm:$0xff]
    %v388 = vld [vmem:[%s6 + $0xf8] sm:$0xff]
    %v389 = vld [vmem:[%s6 + $0x100] sm:$0xff]
    %v390 = vld [vmem:[%s6 + $0x108] sm:$0xff]
    %v391 = vld [vmem:[%s6 + $0x110] sm:$0xff]
    %v392 = vld [vmem:[%s6 + $0x118] sm:$0xff]
    %v393 = vld [vmem:[%s6 + $0x120] sm:$0xff]
    %v394 = vld [vmem:[%s6 + $0x128] sm:$0xff]
    %v395 = vld [vmem:[%s6 + $0x130] sm:$0xff]
    %v396 = vld [vmem:[%s6 + $0x138] sm:$0xff]
    %v397 = vld [vmem:[%s6 + $0x140] sm:$0xff]
    %v398 = vld [vmem:[%s6 + $0x148] sm:$0xff]
    %v399 = vld [vmem:[%s6 + $0x150] sm:$0xff]
    %v400 = vld [vmem:[%s6 + $0x158] sm:$0xff]
    %v401 = vld [vmem:[%s6 + $0x160] sm:$0xff]
    %v402 = vld [vmem:[%s6 + $0x168] sm:$0xff]
    %v403 = vld [vmem:[%s6 + $0x170] sm:$0xff]
    %v404 = vld [vmem:[%s6 + $0x178] sm:$0xff]
    %405 = vmatprep.subr.mxu0 0.0
    %406 = vmatpush1.msra.mxu0 %v357
    %407 = vmatprep.subr.mxu0 0.0
    %408 = vmatpush1.msra.mxu0 %v358
    %409 = vmatprep.subr.mxu0 0.0
    %410 = vmatpush1.msra.mxu0 %v359
    %411 = vmatprep.subr.mxu0 0.0
    %412 = vmatpush1.msra.mxu0 %v360
    %413 = vmatprep.subr.mxu0 0.0
    %414 = vmatpush1.msra.mxu0 %v361
    %415 = vmatprep.subr.mxu0 0.0
    %416 = vmatpush1.msra.mxu0 %v362
    %417 = vmatprep.subr.mxu0 0.0
    %418 = vmatpush1.msra.mxu0 %v363
    %419 = vmatprep.subr.mxu0 0.0
    %420 = vmatpush1.msra.mxu0 %v364
    %421 = vmatprep.subr.mxu0 0.0
    %422 = vmatpush1.msra.mxu0 %v365
    %423 = vmatprep.subr.mxu0 0.0
    %424 = vmatpush1.msra.mxu0 %v366
    %425 = vmatprep.subr.mxu0 0.0
    %426 = vmatpush1.msra.mxu0 %v367
    %427 = vmatprep.subr.mxu0 0.0
    %428 = vmatpush1.msra.mxu0 %v368
    %429 = vmatprep.subr.mxu0 0.0
    %430 = vmatpush1.msra.mxu0 %v369
    %431 = vmatprep.subr.mxu0 0.0
    %432 = vmatpush1.msra.mxu0 %v370
    %433 = vmatprep.subr.mxu0 0.0
    %434 = vmatpush1.msra.mxu0 %v371
    %435 = vmatprep.subr.mxu0 0.0
    %436 = vmatpush1.msra.mxu0 %v372
    %437 = vmatprep.subr.mxu0 0.0
    %438 = vmatpush1.msra.mxu0 %v373
    %439 = vmatprep.subr.mxu0 0.0
    %440 = vmatpush1.msra.mxu0 %v374
    %441 = vmatprep.subr.mxu0 0.0
    %442 = vmatpush1.msra.mxu0 %v375
    %443 = vmatprep.subr.mxu0 0.0
    %444 = vmatpush1.msra.mxu0 %v376
    %445 = vmatprep.subr.mxu0 0.0
    %446 = vmatpush1.msra.mxu0 %v377
    %447 = vmatprep.subr.mxu0 0.0
    %448 = vmatpush1.msra.mxu0 %v378
    %449 = vmatprep.subr.mxu0 0.0
    %450 = vmatpush1.msra.mxu0 %v379
    %451 = vmatprep.subr.mxu0 0.0
    %452 = vmatpush1.msra.mxu0 %v380
    %453 = vmatprep.subr.mxu0 0.0
    %454 = vmatpush1.msra.mxu0 %v381
    %455 = vmatprep.subr.mxu0 0.0
    %456 = vmatpush1.msra.mxu0 %v382
    %457 = vmatprep.subr.mxu0 0.0
    %458 = vmatpush1.msra.mxu0 %v383
    %459 = vmatprep.subr.mxu0 0.0
    %460 = vmatpush1.msra.mxu0 %v384
    %461 = vmatprep.subr.mxu0 0.0
    %462 = vmatpush1.msra.mxu0 %v385
    %463 = vmatprep.subr.mxu0 0.0
    %464 = vmatpush1.msra.mxu0 %v386
    %465 = vmatprep.subr.mxu0 0.0
    %466 = vmatpush1.msra.mxu0 %v387
    %467 = vmatprep.subr.mxu0 0.0
    %468 = vmatpush1.msra.mxu0 %v388
    %469 = vmatprep.mubr.f32.mxu0 %v188
    %470 = vmatmul.mubr.f32.gmra.mrb[0].mxu0 %v266
    %v471 = vpop.f32.mrb[0].mxu0
    %v472 = vadd.f32 0.0, %v471
    %v473 = vpop.f32.mrb[0].mxu0
    %474 = vmatprep.mubr.f32.mxu0 %v189
    %475 = vmatmul.mubr.f32.gmra.mrb[0].mxu0 %v271
    %v476 = vpop.f32.mrb[0].mxu0
    %v477 = vadd.f32 0.0, %v476
    %v478 = vpop.f32.mrb[0].mxu0
    %479 = vdwg.mxu0
    %480 = vmatprep.subr.mxu0 0.0
    %481 = vmatpush1.msra.mxu0 %v389
    %482 = vmatprep.subr.mxu0 0.0
    %483 = vmatpush1.msra.mxu0 %v390
    %484 = vmatprep.subr.mxu0 0.0
    %485 = vmatpush1.msra.mxu0 %v391
    %486 = vmatprep.subr.mxu0 0.0
    %487 = vmatpush1.msra.mxu0 %v392
    %488 = vmatprep.subr.mxu0 0.0
    %489 = vmatpush1.msra.mxu0 %v393
    %490 = vmatprep.subr.mxu0 0.0
    %491 = vmatpush1.msra.mxu0 %v394
    %492 = vmatprep.subr.mxu0 0.0
    %493 = vmatpush1.msra.mxu0 %v395
    %494 = vmatprep.subr.mxu0 0.0
    %495 = vmatpush1.msra.mxu0 %v396
    %496 = vmatprep.subr.mxu0 0.0
    %497 = vmatpush1.msra.mxu0 %v397
    %498 = vmatprep.subr.mxu0 0.0
    %499 = vmatpush1.msra.mxu0 %v398
    %500 = vmatprep.subr.mxu0 0.0
    %501 = vmatpush1.msra.mxu0 %v399
    %502 = vmatprep.subr.mxu0 0.0
    %503 = vmatpush1.msra.mxu0 %v400
    %504 = vmatprep.subr.mxu0 0.0
    %505 = vmatpush1.msra.mxu0 %v401
    %506 = vmatprep.subr.mxu0 0.0
    %507 = vmatpush1.msra.mxu0 %v402
    %508 = vmatprep.subr.mxu0 0.0
    %509 = vmatpush1.msra.mxu0 %v403
    %510 = vmatprep.subr.mxu0 0.0
    %511 = vmatpush1.msra.mxu0 %v404
    %512 = vmatprep.subr.mxu0 0.0
    %513 = vmatpush1.msra.mxu0 0.0
    %514 = vmatprep.subr.mxu0 0.0
    %515 = vmatpush1.msra.mxu0 0.0
    %516 = vmatprep.subr.mxu0 0.0
    %517 = vmatpush1.msra.mxu0 0.0
    %518 = vmatprep.subr.mxu0 0.0
    %519 = vmatpush1.msra.mxu0 0.0
    %520 = vmatprep.subr.mxu0 0.0
    %521 = vmatpush1.msra.mxu0 0.0
    %522 = vmatprep.subr.mxu0 0.0
    %523 = vmatpush1.msra.mxu0 0.0
    %524 = vmatprep.subr.mxu0 0.0
    %525 = vmatpush1.msra.mxu0 0.0
    %526 = vmatprep.subr.mxu0 0.0
    %527 = vmatpush1.msra.mxu0 0.0
    %528 = vmatprep.subr.mxu0 0.0
    %529 = vmatpush1.msra.mxu0 0.0
    %530 = vmatprep.subr.mxu0 0.0
    %531 = vmatpush1.msra.mxu0 0.0
    %532 = vmatprep.subr.mxu0 0.0
    %533 = vmatpush1.msra.mxu0 0.0
    %534 = vmatprep.subr.mxu0 0.0
    %535 = vmatpush1.msra.mxu0 0.0
    %536 = vmatprep.subr.mxu0 0.0
    %537 = vmatpush1.msra.mxu0 0.0
    %538 = vmatprep.subr.mxu0 0.0
    %539 = vmatpush1.msra.mxu0 0.0
    %540 = vmatprep.subr.mxu0 0.0
    %541 = vmatpush1.msra.mxu0 0.0
    %542 = vmatprep.subr.mxu0 0.0
    %543 = vmatpush1.msra.mxu0 0.0
    %544 = vmatprep.mubr.f32.mxu0 0.0
    %545 = vmatmul.mubr.f32.gmra.mrb[0].mxu0 %v349
    %v546 = vpop.f32.mrb[0].mxu0
    %v547 = vadd.f32 %v472, %v546
    %v548 = vpop.f32.mrb[0].mxu0
    %549 = vmatprep.mubr.f32.mxu0 0.0
    %550 = vmatmul.mubr.f32.gmra.mrb[0].mxu0 %v354
    %v551 = vpop.f32.mrb[0].mxu0
    %v552 = vadd.f32 %v477, %v551
    %v553 = vpop.f32.mrb[0].mxu0
    %554 = vdwg.mxu0
    %v555 = vld [vmem:[%s7] sm:$0x1]
    %v557 = vlaneseq
    %v558 = vshrl.u32 %v557, 7
    %v559 = vsub.s32 0, %v558
    %v560 = vrot.slane %v555, %v559
    %v562 = vmul.f32 %v547, %v560
    %v563 = vmul.f32 %v552, %v560
    %v564 = vld [vmem:[%s8] sm:$0x1]
    %v566 = vlaneseq
    %v567 = vshrl.u32 %v566, 7
    %v568 = vsub.s32 0, %v567
    %v569 = vrot.slane %v564, %v568
    %v571 = vadd.f32 %v562, %v569
    %v572 = vadd.f32 %v563, %v569
    %v573 = vmax.f32 %v571, 0.0
    %v574 = vmax.f32 %v572, 0.0
    %v575 = vld [vmem:[%s9] sm:$0xff]
    %v577 = vsel %vm192, %v575, 0
    %579 = vmatprep.subr.mxu0 0.0
    %580 = vmatpush1.msra.mxu0 %v573
    %581 = vmatprep.subr.mxu0 0.0
    %582 = vmatpush1.msra.mxu0 %v574
    %583 = vmatprep.subr.mxu0 0.0
    %584 = vmatpush1.msra.mxu0 0.0
    %585 = vmatprep.subr.mxu0 0.0
    %586 = vmatpush1.msra.mxu0 0.0
    %587 = vmatprep.subr.mxu0 0.0
    %588 = vmatpush1.msra.mxu0 0.0
    %589 = vmatprep.subr.mxu0 0.0
    %590 = vmatpush1.msra.mxu0 0.0
    %591 = vmatprep.subr.mxu0 0.0
    %592 = vmatpush1.msra.mxu0 0.0
    %593 = vmatprep.subr.mxu0 0.0
    %594 = vmatpush1.msra.mxu0 0.0
    %595 = vmatprep.subr.mxu0 0.0
    %596 = vmatpush1.msra.mxu0 0.0
    %597 = vmatprep.subr.mxu0 0.0
    %598 = vmatpush1.msra.mxu0 0.0
    %599 = vmatprep.subr.mxu0 0.0
    %600 = vmatpush1.msra.mxu0 0.0
    %601 = vmatprep.subr.mxu0 0.0
    %602 = vmatpush1.msra.mxu0 0.0
    %603 = vmatprep.subr.mxu0 0.0
    %604 = vmatpush1.msra.mxu0 0.0
    %605 = vmatprep.subr.mxu0 0.0
    %606 = vmatpush1.msra.mxu0 0.0
    %607 = vmatprep.subr.mxu0 0.0
    %608 = vmatpush1.msra.mxu0 0.0
    %609 = vmatprep.subr.mxu0 0.0
    %610 = vmatpush1.msra.mxu0 0.0
    %611 = vmatprep.subr.mxu0 0.0
    %612 = vmatpush1.msra.mxu0 0.0
    %613 = vmatprep.subr.mxu0 0.0
    %614 = vmatpush1.msra.mxu0 0.0
    %615 = vmatprep.subr.mxu0 0.0
    %616 = vmatpush1.msra.mxu0 0.0
    %617 = vmatprep.subr.mxu0 0.0
    %618 = vmatpush1.msra.mxu0 0.0
    %619 = vmatprep.subr.mxu0 0.0
    %620 = vmatpush1.msra.mxu0 0.0
    %621 = vmatprep.subr.mxu0 0.0
    %622 = vmatpush1.msra.mxu0 0.0
    %623 = vmatprep.subr.mxu0 0.0
    %624 = vmatpush1.msra.mxu0 0.0
    %625 = vmatprep.subr.mxu0 0.0
    %626 = vmatpush1.msra.mxu0 0.0
    %627 = vmatprep.subr.mxu0 0.0
    %628 = vmatpush1.msra.mxu0 0.0
    %629 = vmatprep.subr.mxu0 0.0
    %630 = vmatpush1.msra.mxu0 0.0
    %631 = vmatprep.subr.mxu0 0.0
    %632 = vmatpush1.msra.mxu0 0.0
    %633 = vmatprep.subr.mxu0 0.0
    %634 = vmatpush1.msra.mxu0 0.0
    %635 = vmatprep.subr.mxu0 0.0
    %636 = vmatpush1.msra.mxu0 0.0
    %637 = vmatprep.subr.mxu0 0.0
    %638 = vmatpush1.msra.mxu0 0.0
    %639 = vmatprep.subr.mxu0 0.0
    %640 = vmatpush1.msra.mxu0 0.0
    %641 = vmatprep.subr.mxu0 0.0
    %642 = vmatpush1.msra.mxu0 0.0
    %643 = vmatprep.mubr.f32.mxu0 0.0
    %644 = vmatmul.mubr.f32.gmra.mrb[0].mxu0 %v577
    %v645 = vpop.f32.mrb[0].mxu0
    %v646 = vadd.f32 0.0, %v645
    %v647 = vpop.f32.mrb[0].mxu0
    %648 = vdwg.mxu0
    %v649 = vld [vmem:[%s10] sm:$0xff]
    %v651 = vsel %vm192, %v649, 0
    %653 = vmatprep.subr.mxu0 0.0
    %654 = vmatpush1.msra.mxu0 %v573
    %655 = vmatprep.subr.mxu0 0.0
    %656 = vmatpush1.msra.mxu0 %v574
    %657 = vmatprep.subr.mxu0 0.0
    %658 = vmatpush1.msra.mxu0 0.0
    %659 = vmatprep.subr.mxu0 0.0
    %660 = vmatpush1.msra.mxu0 0.0
    %661 = vmatprep.subr.mxu0 0.0
    %662 = vmatpush1.msra.mxu0 0.0
    %663 = vmatprep.subr.mxu0 0.0
    %664 = vmatpush1.msra.mxu0 0.0
    %665 = vmatprep.subr.mxu0 0.0
    %666 = vmatpush1.msra.mxu0 0.0
    %667 = vmatprep.subr.mxu0 0.0
    %668 = vmatpush1.msra.mxu0 0.0
    %669 = vmatprep.subr.mxu0 0.0
    %670 = vmatpush1.msra.mxu0 0.0
    %671 = vmatprep.subr.mxu0 0.0
    %672 = vmatpush1.msra.mxu0 0.0
    %673 = vmatprep.subr.mxu0 0.0
    %674 = vmatpush1.msra.mxu0 0.0
    %675 = vmatprep.subr.mxu0 0.0
    %676 = vmatpush1.msra.mxu0 0.0
    %677 = vmatprep.subr.mxu0 0.0
    %678 = vmatpush1.msra.mxu0 0.0
    %679 = vmatprep.subr.mxu0 0.0
    %680 = vmatpush1.msra.mxu0 0.0
    %681 = vmatprep.subr.mxu0 0.0
    %682 = vmatpush1.msra.mxu0 0.0
    %683 = vmatprep.subr.mxu0 0.0
    %684 = vmatpush1.msra.mxu0 0.0
    %685 = vmatprep.subr.mxu0 0.0
    %686 = vmatpush1.msra.mxu0 0.0
    %687 = vmatprep.subr.mxu0 0.0
    %688 = vmatpush1.msra.mxu0 0.0
    %689 = vmatprep.subr.mxu0 0.0
    %690 = vmatpush1.msra.mxu0 0.0
    %691 = vmatprep.subr.mxu0 0.0
    %692 = vmatpush1.msra.mxu0 0.0
    %693 = vmatprep.subr.mxu0 0.0
    %694 = vmatpush1.msra.mxu0 0.0
    %695 = vmatprep.subr.mxu0 0.0
    %696 = vmatpush1.msra.mxu0 0.0
    %697 = vmatprep.subr.mxu0 0.0
    %698 = vmatpush1.msra.mxu0 0.0
    %699 = vmatprep.subr.mxu0 0.0
    %700 = vmatpush1.msra.mxu0 0.0
    %701 = vmatprep.subr.mxu0 0.0
    %702 = vmatpush1.msra.mxu0 0.0
    %703 = vmatprep.subr.mxu0 0.0
    %704 = vmatpush1.msra.mxu0 0.0
    %705 = vmatprep.subr.mxu0 0.0
    %706 = vmatpush1.msra.mxu0 0.0
    %707 = vmatprep.subr.mxu0 0.0
    %708 = vmatpush1.msra.mxu0 0.0
    %709 = vmatprep.subr.mxu0 0.0
    %710 = vmatpush1.msra.mxu0 0.0
    %711 = vmatprep.subr.mxu0 0.0
    %712 = vmatpush1.msra.mxu0 0.0
    %713 = vmatprep.subr.mxu0 0.0
    %714 = vmatpush1.msra.mxu0 0.0
    %715 = vmatprep.subr.mxu0 0.0
    %716 = vmatpush1.msra.mxu0 0.0
    %717 = vmatprep.mubr.f32.mxu0 0.0
    %718 = vmatmul.mubr.f32.gmra.mrb[0].mxu0 %v651
    %v719 = vpop.f32.mrb[0].mxu0
    %v720 = vadd.f32 0.0, %v719
    %v721 = vpop.f32.mrb[0].mxu0
    %722 = vdwg.mxu0
    %v723 = vmax.f32 %v646, %v720
    %v724 = vld [vmem:[%s11] sm:$0xff]
    %v725 = vld [vmem:[%s11 + $0x8] sm:$0xff]
    %v726 = vld [vmem:[%s11 + $0x10] sm:$0xff]
    %v727 = vld [vmem:[%s11 + $0x18] sm:$0xff]
    %v728 = vld [vmem:[%s11 + $0x20] sm:$0xff]
    %v729 = vld [vmem:[%s11 + $0x28] sm:$0xff]
    %v730 = vld [vmem:[%s11 + $0x30] sm:$0xff]
    %v731 = vld [vmem:[%s11 + $0x38] sm:$0xff]
    %v732 = vld [vmem:[%s11 + $0x40] sm:$0xff]
    %v733 = vld [vmem:[%s11 + $0x48] sm:$0xff]
    %v734 = vld [vmem:[%s11 + $0x50] sm:$0xff]
    %v735 = vld [vmem:[%s11 + $0x58] sm:$0xff]
    %v736 = vld [vmem:[%s11 + $0x60] sm:$0xff]
    %v737 = vld [vmem:[%s11 + $0x68] sm:$0xff]
    %v738 = vld [vmem:[%s11 + $0x70] sm:$0xff]
    %v739 = vld [vmem:[%s11 + $0x78] sm:$0xff]
    %v740 = vld [vmem:[%s11 + $0x80] sm:$0xff]
    %v741 = vld [vmem:[%s11 + $0x88] sm:$0xff]
    %v742 = vld [vmem:[%s11 + $0x90] sm:$0xff]
    %v743 = vld [vmem:[%s11 + $0x98] sm:$0xff]
    %v744 = vld [vmem:[%s11 + $0xa0] sm:$0xff]
    %v745 = vld [vmem:[%s11 + $0xa8] sm:$0xff]
    %v746 = vld [vmem:[%s11 + $0xb0] sm:$0xff]
    %v747 = vld [vmem:[%s11 + $0xb8] sm:$0xff]
    %v748 = vld [vmem:[%s11 + $0xc0] sm:$0xff]
    %v749 = vld [vmem:[%s11 + $0xc8] sm:$0xff]
    %v750 = vld [vmem:[%s11 + $0xd0] sm:$0xff]
    %v751 = vld [vmem:[%s11 + $0xd8] sm:$0xff]
    %v752 = vld [vmem:[%s11 + $0xe0] sm:$0xff]
    %v753 = vld [vmem:[%s11 + $0xe8] sm:$0xff]
    %v754 = vld [vmem:[%s11 + $0xf0] sm:$0xff]
    %v755 = vld [vmem:[%s11 + $0xf8] sm:$0xff]
    %v756 = vld [vmem:[%s13] sm:$0xf]
    %v758 = vlaneseq
    %v759 = vshrl.u32 %v758, 7
    %v760 = vsub.s32 0, %v759
    %v761 = vrot.slane %v756, %v760
    %v762 = vlaneseq
    %v763 = vshrl.u32 %v762, 7
    %v764 = vsub.s32 1, %v763
    %v765 = vrot.slane %v756, %v764
    %v766 = vlaneseq
    %v767 = vshrl.u32 %v766, 7
    %v768 = vsub.s32 2, %v767
    %v769 = vrot.slane %v756, %v768
    %v770 = vlaneseq
    %v771 = vshrl.u32 %v770, 7
    %v772 = vsub.s32 3, %v771
    %v773 = vrot.slane %v756, %v772
    %vm778 = vcmask 523264
    %v780 = vsel %vm778, %v723, 0
    %782 = vmatprep.subr.mxu0 %v725
    %783 = vmatpush1.msra.mxu0 %v724
    %784 = vmatprep.subr.mxu0 %v729
    %785 = vmatpush1.msra.mxu0 %v728
    %786 = vmatprep.subr.mxu0 %v733
    %787 = vmatpush1.msra.mxu0 %v732
    %788 = vmatprep.subr.mxu0 %v737
    %789 = vmatpush1.msra.mxu0 %v736
    %790 = vmatprep.subr.mxu0 %v741
    %791 = vmatpush1.msra.mxu0 %v740
    %792 = vmatprep.subr.mxu0 %v745
    %793 = vmatpush1.msra.mxu0 %v744
    %794 = vmatprep.subr.mxu0 %v749
    %795 = vmatpush1.msra.mxu0 %v748
    %796 = vmatprep.subr.mxu0 %v753
    %797 = vmatpush1.msra.mxu0 %v752
    %798 = vmatprep.subr.mxu0 0.0
    %799 = vmatpush1.msra.mxu0 0.0
    %800 = vmatprep.subr.mxu0 0.0
    %801 = vmatpush1.msra.mxu0 0.0
    %802 = vmatprep.subr.mxu0 0.0
    %803 = vmatpush1.msra.mxu0 0.0
    %804 = vmatprep.subr.mxu0 0.0
    %805 = vmatpush1.msra.mxu0 0.0
    %806 = vmatprep.subr.mxu0 0.0
    %807 = vmatpush1.msra.mxu0 0.0
    %808 = vmatprep.subr.mxu0 0.0
    %809 = vmatpush1.msra.mxu0 0.0
    %810 = vmatprep.subr.mxu0 0.0
    %811 = vmatpush1.msra.mxu0 0.0
    %812 = vmatprep.subr.mxu0 0.0
    %813 = vmatpush1.msra.mxu0 0.0
    %814 = vmatprep.subr.mxu0 0.0
    %815 = vmatpush1.msra.mxu0 0.0
    %816 = vmatprep.subr.mxu0 0.0
    %817 = vmatpush1.msra.mxu0 0.0
    %818 = vmatprep.subr.mxu0 0.0
    %819 = vmatpush1.msra.mxu0 0.0
    %820 = vmatprep.subr.mxu0 0.0
    %821 = vmatpush1.msra.mxu0 0.0
    %822 = vmatprep.subr.mxu0 0.0
    %823 = vmatpush1.msra.mxu0 0.0
    %824 = vmatprep.subr.mxu0 0.0
    %825 = vmatpush1.msra.mxu0 0.0
    %826 = vmatprep.subr.mxu0 0.0
    %827 = vmatpush1.msra.mxu0 0.0
    %828 = vmatprep.subr.mxu0 0.0
    %829 = vmatpush1.msra.mxu0 0.0
    %830 = vmatprep.subr.mxu0 0.0
    %831 = vmatpush1.msra.mxu0 0.0
    %832 = vmatprep.subr.mxu0 0.0
    %833 = vmatpush1.msra.mxu0 0.0
    %834 = vmatprep.subr.mxu0 0.0
    %835 = vmatpush1.msra.mxu0 0.0
    %836 = vmatprep.subr.mxu0 0.0
    %837 = vmatpush1.msra.mxu0 0.0
    %838 = vmatprep.subr.mxu0 0.0
    %839 = vmatpush1.msra.mxu0 0.0
    %840 = vmatprep.subr.mxu0 0.0
    %841 = vmatpush1.msra.mxu0 0.0
    %842 = vmatprep.subr.mxu0 0.0
    %843 = vmatpush1.msra.mxu0 0.0
    %844 = vmatprep.subr.mxu0 0.0
    %845 = vmatpush1.msra.mxu0 0.0
    %846 = vmatprep.mubr.f32.mxu0 0.0
    %847 = vmatmul.mubr.f32.gmra.mrb[0].mxu0 %v780
    %v848 = vpop.f32.mrb[0].mxu0
    %v849 = vadd.f32 %v761, %v848
    %v850 = vpop.f32.mrb[0].mxu0
    %v851 = vadd.f32 %v765, %v850
    %852 = vdwg.mxu0
    %853 = vmatprep.subr.mxu0 %v727
    %854 = vmatpush1.msra.mxu0 %v726
    %855 = vmatprep.subr.mxu0 %v731
    %856 = vmatpush1.msra.mxu0 %v730
    %857 = vmatprep.subr.mxu0 %v735
    %858 = vmatpush1.msra.mxu0 %v734
    %859 = vmatprep.subr.mxu0 %v739
    %860 = vmatpush1.msra.mxu0 %v738
    %861 = vmatprep.subr.mxu0 %v743
    %862 = vmatpush1.msra.mxu0 %v742
    %863 = vmatprep.subr.mxu0 %v747
    %864 = vmatpush1.msra.mxu0 %v746
    %865 = vmatprep.subr.mxu0 %v751
    %866 = vmatpush1.msra.mxu0 %v750
    %867 = vmatprep.subr.mxu0 %v755
    %868 = vmatpush1.msra.mxu0 %v754
    %869 = vmatprep.subr.mxu0 0.0
    %870 = vmatpush1.msra.mxu0 0.0
    %871 = vmatprep.subr.mxu0 0.0
    %872 = vmatpush1.msra.mxu0 0.0
    %873 = vmatprep.subr.mxu0 0.0
    %874 = vmatpush1.msra.mxu0 0.0
    %875 = vmatprep.subr.mxu0 0.0
    %876 = vmatpush1.msra.mxu0 0.0
    %877 = vmatprep.subr.mxu0 0.0
    %878 = vmatpush1.msra.mxu0 0.0
    %879 = vmatprep.subr.mxu0 0.0
    %880 = vmatpush1.msra.mxu0 0.0
    %881 = vmatprep.subr.mxu0 0.0
    %882 = vmatpush1.msra.mxu0 0.0
    %883 = vmatprep.subr.mxu0 0.0
    %884 = vmatpush1.msra.mxu0 0.0
    %885 = vmatprep.subr.mxu0 0.0
    %886 = vmatpush1.msra.mxu0 0.0
    %887 = vmatprep.subr.mxu0 0.0
    %888 = vmatpush1.msra.mxu0 0.0
    %889 = vmatprep.subr.mxu0 0.0
    %890 = vmatpush1.msra.mxu0 0.0
    %891 = vmatprep.subr.mxu0 0.0
    %892 = vmatpush1.msra.mxu0 0.0
    %893 = vmatprep.subr.mxu0 0.0
    %894 = vmatpush1.msra.mxu0 0.0
    %895 = vmatprep.subr.mxu0 0.0
    %896 = vmatpush1.msra.mxu0 0.0
    %897 = vmatprep.subr.mxu0 0.0
    %898 = vmatpush1.msra.mxu0 0.0
    %899 = vmatprep.subr.mxu0 0.0
    %900 = vmatpush1.msra.mxu0 0.0
    %901 = vmatprep.subr.mxu0 0.0
    %902 = vmatpush1.msra.mxu0 0.0
    %903 = vmatprep.subr.mxu0 0.0
    %904 = vmatpush1.msra.mxu0 0.0
    %905 = vmatprep.subr.mxu0 0.0
    %906 = vmatpush1.msra.mxu0 0.0
    %907 = vmatprep.subr.mxu0 0.0
    %908 = vmatpush1.msra.mxu0 0.0
    %909 = vmatprep.subr.mxu0 0.0
    %910 = vmatpush1.msra.mxu0 0.0
    %911 = vmatprep.subr.mxu0 0.0
    %912 = vmatpush1.msra.mxu0 0.0
    %913 = vmatprep.subr.mxu0 0.0
    %914 = vmatpush1.msra.mxu0 0.0
    %915 = vmatprep.subr.mxu0 0.0
    %916 = vmatpush1.msra.mxu0 0.0
    %917 = vmatprep.mubr.f32.mxu0 0.0
    %918 = vmatmul.mubr.f32.gmra.mrb[0].mxu0 %v780
    %v919 = vpop.f32.mrb[0].mxu0
    %v920 = vadd.f32 %v769, %v919
    %v921 = vpop.f32.mrb[0].mxu0
    %v922 = vadd.f32 %v773, %v921
    %923 = vdwg.mxu0
    %v924 = vld [vmem:[%s12] sm:$0xff]
    %v925 = vld [vmem:[%s12 + $0x8] sm:$0xff]
    %v926 = vld [vmem:[%s12 + $0x10] sm:$0xff]
    %v927 = vld [vmem:[%s12 + $0x18] sm:$0xff]
    %v928 = vld [vmem:[%s12 + $0x20] sm:$0xff]
    %v929 = vld [vmem:[%s12 + $0x28] sm:$0xff]
    %v930 = vld [vmem:[%s12 + $0x30] sm:$0xff]
    %v931 = vld [vmem:[%s12 + $0x38] sm:$0xff]
    %v932 = vld [vmem:[%s12 + $0x40] sm:$0xff]
    %v933 = vld [vmem:[%s12 + $0x48] sm:$0xff]
    %v934 = vld [vmem:[%s12 + $0x50] sm:$0xff]
    %v935 = vld [vmem:[%s12 + $0x58] sm:$0xff]
    %v936 = vld [vmem:[%s12 + $0x60] sm:$0xff]
    %v937 = vld [vmem:[%s12 + $0x68] sm:$0xff]
    %v938 = vld [vmem:[%s12 + $0x70] sm:$0xff]
    %v939 = vld [vmem:[%s12 + $0x78] sm:$0xff]
    %v940 = vld [vmem:[%s12 + $0x80] sm:$0xff]
    %v941 = vld [vmem:[%s12 + $0x88] sm:$0xff]
    %v942 = vld [vmem:[%s12 + $0x90] sm:$0xff]
    %v943 = vld [vmem:[%s12 + $0x98] sm:$0xff]
    %v944 = vld [vmem:[%s12 + $0xa0] sm:$0xff]
    %v945 = vld [vmem:[%s12 + $0xa8] sm:$0xff]
    %v946 = vld [vmem:[%s12 + $0xb0] sm:$0xff]
    %v947 = vld [vmem:[%s12 + $0xb8] sm:$0xff]
    %v948 = vld [vmem:[%s12 + $0xc0] sm:$0xff]
    %v949 = vld [vmem:[%s12 + $0xc8] sm:$0xff]
    %v950 = vld [vmem:[%s12 + $0xd0] sm:$0xff]
    %v951 = vld [vmem:[%s12 + $0xd8] sm:$0xff]
    %v952 = vld [vmem:[%s12 + $0xe0] sm:$0xff]
    %v953 = vld [vmem:[%s12 + $0xe8] sm:$0xff]
    %v954 = vld [vmem:[%s12 + $0xf0] sm:$0xff]
    %v955 = vld [vmem:[%s12 + $0xf8] sm:$0xff]
    %v956 = vld [vmem:[%s12 + $0x100] sm:$0xff]
    %v957 = vld [vmem:[%s12 + $0x108] sm:$0xff]
    %v958 = vld [vmem:[%s12 + $0x110] sm:$0xff]
    %v959 = vld [vmem:[%s12 + $0x118] sm:$0xff]
    %v960 = vld [vmem:[%s12 + $0x120] sm:$0xff]
    %v961 = vld [vmem:[%s12 + $0x128] sm:$0xff]
    %v962 = vld [vmem:[%s12 + $0x130] sm:$0xff]
    %v963 = vld [vmem:[%s12 + $0x138] sm:$0xff]
    %v964 = vld [vmem:[%s12 + $0x140] sm:$0xff]
    %v965 = vld [vmem:[%s12 + $0x148] sm:$0xff]
    %v966 = vld [vmem:[%s12 + $0x150] sm:$0xff]
    %v967 = vld [vmem:[%s12 + $0x158] sm:$0xff]
    %v968 = vld [vmem:[%s12 + $0x160] sm:$0xff]
    %v969 = vld [vmem:[%s12 + $0x168] sm:$0xff]
    %v970 = vld [vmem:[%s12 + $0x170] sm:$0xff]
    %v971 = vld [vmem:[%s12 + $0x178] sm:$0xff]
    %v972 = vld [vmem:[%s12 + $0x180] sm:$0xff]
    %v973 = vld [vmem:[%s12 + $0x188] sm:$0xff]
    %v974 = vld [vmem:[%s12 + $0x190] sm:$0xff]
    %v975 = vld [vmem:[%s12 + $0x198] sm:$0xff]
    %v976 = vld [vmem:[%s12 + $0x1a0] sm:$0xff]
    %v977 = vld [vmem:[%s12 + $0x1a8] sm:$0xff]
    %v978 = vld [vmem:[%s12 + $0x1b0] sm:$0xff]
    %v979 = vld [vmem:[%s12 + $0x1b8] sm:$0xff]
    %v980 = vld [vmem:[%s12 + $0x1c0] sm:$0xff]
    %v981 = vld [vmem:[%s12 + $0x1c8] sm:$0xff]
    %v982 = vld [vmem:[%s12 + $0x1d0] sm:$0xff]
    %v983 = vld [vmem:[%s12 + $0x1d8] sm:$0xff]
    %v984 = vld [vmem:[%s12 + $0x1e0] sm:$0xff]
    %v985 = vld [vmem:[%s12 + $0x1e8] sm:$0xff]
    %v986 = vld [vmem:[%s12 + $0x1f0] sm:$0xff]
    %v987 = vld [vmem:[%s12 + $0x1f8] sm:$0xff]
    %988 = vmatprep.subr.mxu0 %v925
    %989 = vmatpush1.msra.mxu0 %v924
    %990 = vmatprep.subr.mxu0 %v929
    %991 = vmatpush1.msra.mxu0 %v928
    %992 = vmatprep.subr.mxu0 %v933
    %993 = vmatpush1.msra.mxu0 %v932
    %994 = vmatprep.subr.mxu0 %v937
    %995 = vmatpush1.msra.mxu0 %v936
    %996 = vmatprep.subr.mxu0 %v941
    %997 = vmatpush1.msra.mxu0 %v940
    %998 = vmatprep.subr.mxu0 %v945
    %999 = vmatpush1.msra.mxu0 %v944
    %1000 = vmatprep.subr.mxu0 %v949
    %1001 = vmatpush1.msra.mxu0 %v948
    %1002 = vmatprep.subr.mxu0 %v953
    %1003 = vmatpush1.msra.mxu0 %v952
    %1004 = vmatprep.subr.mxu0 %v957
    %1005 = vmatpush1.msra.mxu0 %v956
    %1006 = vmatprep.subr.mxu0 %v961
    %1007 = vmatpush1.msra.mxu0 %v960
    %1008 = vmatprep.subr.mxu0 %v965
    %1009 = vmatpush1.msra.mxu0 %v964
    %1010 = vmatprep.subr.mxu0 %v969
    %1011 = vmatpush1.msra.mxu0 %v968
    %1012 = vmatprep.subr.mxu0 %v973
    %1013 = vmatpush1.msra.mxu0 %v972
    %1014 = vmatprep.subr.mxu0 %v977
    %1015 = vmatpush1.msra.mxu0 %v976
    %1016 = vmatprep.subr.mxu0 %v981
    %1017 = vmatpush1.msra.mxu0 %v980
    %1018 = vmatprep.subr.mxu0 %v985
    %1019 = vmatpush1.msra.mxu0 %v984
    %1020 = vmatprep.subr.mxu0 0.0
    %1021 = vmatpush1.msra.mxu0 0.0
    %1022 = vmatprep.subr.mxu0 0.0
    %1023 = vmatpush1.msra.mxu0 0.0
    %1024 = vmatprep.subr.mxu0 0.0
    %1025 = vmatpush1.msra.mxu0 0.0
    %1026 = vmatprep.subr.mxu0 0.0
    %1027 = vmatpush1.msra.mxu0 0.0
    %1028 = vmatprep.subr.mxu0 0.0
    %1029 = vmatpush1.msra.mxu0 0.0
    %1030 = vmatprep.subr.mxu0 0.0
    %1031 = vmatpush1.msra.mxu0 0.0
    %1032 = vmatprep.subr.mxu0 0.0
    %1033 = vmatpush1.msra.mxu0 0.0
    %1034 = vmatprep.subr.mxu0 0.0
    %1035 = vmatpush1.msra.mxu0 0.0
    %1036 = vmatprep.subr.mxu0 0.0
    %1037 = vmatpush1.msra.mxu0 0.0
    %1038 = vmatprep.subr.mxu0 0.0
    %1039 = vmatpush1.msra.mxu0 0.0
    %1040 = vmatprep.subr.mxu0 0.0
    %1041 = vmatpush1.msra.mxu0 0.0
    %1042 = vmatprep.subr.mxu0 0.0
    %1043 = vmatpush1.msra.mxu0 0.0
    %1044 = vmatprep.subr.mxu0 0.0
    %1045 = vmatpush1.msra.mxu0 0.0
    %1046 = vmatprep.subr.mxu0 0.0
    %1047 = vmatpush1.msra.mxu0 0.0
    %1048 = vmatprep.subr.mxu0 0.0
    %1049 = vmatpush1.msra.mxu0 0.0
    %1050 = vmatprep.subr.mxu0 0.0
    %1051 = vmatpush1.msra.mxu0 0.0
    %1052 = vmatprep.mubr.f32.mxu0 0.0
    %1053 = vmatmul.mubr.f32.gmra.mrb[0].mxu0 0.0
    %v1054 = vpop.f32.mrb[0].mxu0
    %v1055 = vadd.f32 0.0, %v1054
    %v1056 = vpop.f32.mrb[0].mxu0
    %v1057 = vadd.f32 0.0, %v1056
    %1058 = vdwg.mxu0
    %1059 = vmatprep.subr.mxu0 %v927
    %1060 = vmatpush1.msra.mxu0 %v926
    %1061 = vmatprep.subr.mxu0 %v931
    %1062 = vmatpush1.msra.mxu0 %v930
    %1063 = vmatprep.subr.mxu0 %v935
    %1064 = vmatpush1.msra.mxu0 %v934
    %1065 = vmatprep.subr.mxu0 %v939
    %1066 = vmatpush1.msra.mxu0 %v938
    %1067 = vmatprep.subr.mxu0 %v943
    %1068 = vmatpush1.msra.mxu0 %v942
    %1069 = vmatprep.subr.mxu0 %v947
    %1070 = vmatpush1.msra.mxu0 %v946
    %1071 = vmatprep.subr.mxu0 %v951
    %1072 = vmatpush1.msra.mxu0 %v950
    %1073 = vmatprep.subr.mxu0 %v955
    %1074 = vmatpush1.msra.mxu0 %v954
    %1075 = vmatprep.subr.mxu0 %v959
    %1076 = vmatpush1.msra.mxu0 %v958
    %1077 = vmatprep.subr.mxu0 %v963
    %1078 = vmatpush1.msra.mxu0 %v962
    %1079 = vmatprep.subr.mxu0 %v967
    %1080 = vmatpush1.msra.mxu0 %v966
    %1081 = vmatprep.subr.mxu0 %v971
    %1082 = vmatpush1.msra.mxu0 %v970
    %1083 = vmatprep.subr.mxu0 %v975
    %1084 = vmatpush1.msra.mxu0 %v974
    %1085 = vmatprep.subr.mxu0 %v979
    %1086 = vmatpush1.msra.mxu0 %v978
    %1087 = vmatprep.subr.mxu0 %v983
    %1088 = vmatpush1.msra.mxu0 %v982
    %1089 = vmatprep.subr.mxu0 %v987
    %1090 = vmatpush1.msra.mxu0 %v986
    %1091 = vmatprep.subr.mxu0 0.0
    %1092 = vmatpush1.msra.mxu0 0.0
    %1093 = vmatprep.subr.mxu0 0.0
    %1094 = vmatpush1.msra.mxu0 0.0
    %1095 = vmatprep.subr.mxu0 0.0
    %1096 = vmatpush1.msra.mxu0 0.0
    %1097 = vmatprep.subr.mxu0 0.0
    %1098 = vmatpush1.msra.mxu0 0.0
    %1099 = vmatprep.subr.mxu0 0.0
    %1100 = vmatpush1.msra.mxu0 0.0
    %1101 = vmatprep.subr.mxu0 0.0
    %1102 = vmatpush1.msra.mxu0 0.0
    %1103 = vmatprep.subr.mxu0 0.0
    %1104 = vmatpush1.msra.mxu0 0.0
    %1105 = vmatprep.subr.mxu0 0.0
    %1106 = vmatpush1.msra.mxu0 0.0
    %1107 = vmatprep.subr.mxu0 0.0
    %1108 = vmatpush1.msra.mxu0 0.0
    %1109 = vmatprep.subr.mxu0 0.0
    %1110 = vmatpush1.msra.mxu0 0.0
    %1111 = vmatprep.subr.mxu0 0.0
    %1112 = vmatpush1.msra.mxu0 0.0
    %1113 = vmatprep.subr.mxu0 0.0
    %1114 = vmatpush1.msra.mxu0 0.0
    %1115 = vmatprep.subr.mxu0 0.0
    %1116 = vmatpush1.msra.mxu0 0.0
    %1117 = vmatprep.subr.mxu0 0.0
    %1118 = vmatpush1.msra.mxu0 0.0
    %1119 = vmatprep.subr.mxu0 0.0
    %1120 = vmatpush1.msra.mxu0 0.0
    %1121 = vmatprep.subr.mxu0 0.0
    %1122 = vmatpush1.msra.mxu0 0.0
    %1123 = vmatprep.mubr.f32.mxu0 0.0
    %1124 = vmatmul.mubr.f32.gmra.mrb[0].mxu0 0.0
    %v1125 = vpop.f32.mrb[0].mxu0
    %v1126 = vadd.f32 0.0, %v1125
    %v1127 = vpop.f32.mrb[0].mxu0
    %v1128 = vadd.f32 0.0, %v1127
    %1129 = vdwg.mxu0
    %v1130 = vadd.f32 %v849, %v1055
    %v1131 = vadd.f32 %v851, %v1057
    %v1132 = vadd.f32 %v920, %v1126
    %v1133 = vadd.f32 %v922, %v1128
    %v1134 = vxor.u32 %v1130, 2147483648
    %v1135 = vmul.f32 %v1134, 1.442695
    %v1136 = vpow.pop %v1135
    %v1137 = vadd.f32 %v1136, 1.0
    %v1138 = vrcp.pop %v1137
    %v1139 = vmul.f32 1.0, %v1138
    %v1140 = vxor.u32 %v1131, 2147483648
    %v1141 = vmul.f32 %v1140, 1.442695
    %v1142 = vpow.pop %v1141
    %v1143 = vadd.f32 %v1142, 1.0
    %v1144 = vrcp.pop %v1143
    %v1145 = vmul.f32 1.0, %v1144
    %v1146 = vtanh.pop %v1132
    %v1147 = vxor.u32 %v1133, 2147483648
    %v1148 = vmul.f32 %v1147, 1.442695
    %v1149 = vpow.pop %v1148
    %v1150 = vadd.f32 %v1149, 1.0
    %v1151 = vrcp.pop %v1150
    %v1152 = vmul.f32 1.0, %v1151
    %v1153 = vmul.f32 %v1145, 0.0
    %v1154 = vmul.f32 %v1139, %v1146
    %v1155 = vadd.f32 %v1153, %v1154
    %v1156 = vtanh.pop %v1155
    %v1157 = vmul.f32 %v1152, %v1156
    %1158 = vmatprep.subr.mxu0 %v925
    %1159 = vmatpush1.msra.mxu0 %v924
    %1160 = vmatprep.subr.mxu0 %v929
    %1161 = vmatpush1.msra.mxu0 %v928
    %1162 = vmatprep.subr.mxu0 %v933
    %1163 = vmatpush1.msra.mxu0 %v932
    %1164 = vmatprep.subr.mxu0 %v937
    %1165 = vmatpush1.msra.mxu0 %v936
    %1166 = vmatprep.subr.mxu0 %v941
    %1167 = vmatpush1.msra.mxu0 %v940
    %1168 = vmatprep.subr.mxu0 %v945
    %1169 = vmatpush1.msra.mxu0 %v944
    %1170 = vmatprep.subr.mxu0 %v949
    %1171 = vmatpush1.msra.mxu0 %v948
    %1172 = vmatprep.subr.mxu0 %v953
    %1173 = vmatpush1.msra.mxu0 %v952
    %1174 = vmatprep.subr.mxu0 %v957
    %1175 = vmatpush1.msra.mxu0 %v956
    %1176 = vmatprep.subr.mxu0 %v961
    %1177 = vmatpush1.msra.mxu0 %v960
    %1178 = vmatprep.subr.mxu0 %v965
    %1179 = vmatpush1.msra.mxu0 %v964
    %1180 = vmatprep.subr.mxu0 %v969
    %1181 = vmatpush1.msra.mxu0 %v968
    %1182 = vmatprep.subr.mxu0 %v973
    %1183 = vmatpush1.msra.mxu0 %v972
    %1184 = vmatprep.subr.mxu0 %v977
    %1185 = vmatpush1.msra.mxu0 %v976
    %1186 = vmatprep.subr.mxu0 %v981
    %1187 = vmatpush1.msra.mxu0 %v980
    %1188 = vmatprep.subr.mxu0 %v985
    %1189 = vmatpush1.msra.mxu0 %v984
    %1190 = vmatprep.subr.mxu0 0.0
    %1191 = vmatpush1.msra.mxu0 0.0
    %1192 = vmatprep.subr.mxu0 0.0
    %1193 = vmatpush1.msra.mxu0 0.0
    %1194 = vmatprep.subr.mxu0 0.0
    %1195 = vmatpush1.msra.mxu0 0.0
    %1196 = vmatprep.subr.mxu0 0.0
    %1197 = vmatpush1.msra.mxu0 0.0
    %1198 = vmatprep.subr.mxu0 0.0
    %1199 = vmatpush1.msra.mxu0 0.0
    %1200 = vmatprep.subr.mxu0 0.0
    %1201 = vmatpush1.msra.mxu0 0.0
    %1202 = vmatprep.subr.mxu0 0.0
    %1203 = vmatpush1.msra.mxu0 0.0
    %1204 = vmatprep.subr.mxu0 0.0
    %1205 = vmatpush1.msra.mxu0 0.0
    %1206 = vmatprep.subr.mxu0 0.0
    %1207 = vmatpush1.msra.mxu0 0.0
    %1208 = vmatprep.subr.mxu0 0.0
    %1209 = vmatpush1.msra.mxu0 0.0
    %1210 = vmatprep.subr.mxu0 0.0
    %1211 = vmatpush1.msra.mxu0 0.0
    %1212 = vmatprep.subr.mxu0 0.0
    %1213 = vmatpush1.msra.mxu0 0.0
    %1214 = vmatprep.subr.mxu0 0.0
    %1215 = vmatpush1.msra.mxu0 0.0
    %1216 = vmatprep.subr.mxu0 0.0
    %1217 = vmatpush1.msra.mxu0 0.0
    %1218 = vmatprep.subr.mxu0 0.0
    %1219 = vmatpush1.msra.mxu0 0.0
    %1220 = vmatprep.subr.mxu0 0.0
    %1221 = vmatpush1.msra.mxu0 0.0
    %1222 = vmatprep.mubr.f32.mxu0 0.0
    %1223 = vmatmul.mubr.f32.gmra.mrb[0].mxu0 %v1157
    %v1224 = vpop.f32.mrb[0].mxu0
    %v1225 = vadd.f32 0.0, %v1224
    %v1226 = vpop.f32.mrb[0].mxu0
    %v1227 = vadd.f32 0.0, %v1226
    %1228 = vdwg.mxu0
    %1229 = vmatprep.subr.mxu0 %v927
    %1230 = vmatpush1.msra.mxu0 %v926
    %1231 = vmatprep.subr.mxu0 %v931
    %1232 = vmatpush1.msra.mxu0 %v930
    %1233 = vmatprep.subr.mxu0 %v935
    %1234 = vmatpush1.msra.mxu0 %v934
    %1235 = vmatprep.subr.mxu0 %v939
    %1236 = vmatpush1.msra.mxu0 %v938
    %1237 = vmatprep.subr.mxu0 %v943
    %1238 = vmatpush1.msra.mxu0 %v942
    %1239 = vmatprep.subr.mxu0 %v947
    %1240 = vmatpush1.msra.mxu0 %v946
    %1241 = vmatprep.subr.mxu0 %v951
    %1242 = vmatpush1.msra.mxu0 %v950
    %1243 = vmatprep.subr.mxu0 %v955
    %1244 = vmatpush1.msra.mxu0 %v954
    %1245 = vmatprep.subr.mxu0 %v959
    %1246 = vmatpush1.msra.mxu0 %v958
    %1247 = vmatprep.subr.mxu0 %v963
    %1248 = vmatpush1.msra.mxu0 %v962
    %1249 = vmatprep.subr.mxu0 %v967
    %1250 = vmatpush1.msra.mxu0 %v966
    %1251 = vmatprep.subr.mxu0 %v971
    %1252 = vmatpush1.msra.mxu0 %v970
    %1253 = vmatprep.subr.mxu0 %v975
    %1254 = vmatpush1.msra.mxu0 %v974
    %1255 = vmatprep.subr.mxu0 %v979
    %1256 = vmatpush1.msra.mxu0 %v978
    %1257 = vmatprep.subr.mxu0 %v983
    %1258 = vmatpush1.msra.mxu0 %v982
    %1259 = vmatprep.subr.mxu0 %v987
    %1260 = vmatpush1.msra.mxu0 %v986
    %1261 = vmatprep.subr.mxu0 0.0
    %1262 = vmatpush1.msra.mxu0 0.0
    %1263 = vmatprep.subr.mxu0 0.0
    %1264 = vmatpush1.msra.mxu0 0.0
    %1265 = vmatprep.subr.mxu0 0.0
    %1266 = vmatpush1.msra.mxu0 0.0
    %1267 = vmatprep.subr.mxu0 0.0
    %1268 = vmatpush1.msra.mxu0 0.0
    %1269 = vmatprep.subr.mxu0 0.0
    %1270 = vmatpush1.msra.mxu0 0.0
    %1271 = vmatprep.subr.mxu0 0.0
    %1272 = vmatpush1.msra.mxu0 0.0
    %1273 = vmatprep.subr.mxu0 0.0
    %1274 = vmatpush1.msra.mxu0 0.0
    %1275 = vmatprep.subr.mxu0 0.0
    %1276 = vmatpush1.msra.mxu0 0.0
    %1277 = vmatprep.subr.mxu0 0.0
    %1278 = vmatpush1.msra.mxu0 0.0
    %1279 = vmatprep.subr.mxu0 0.0
    %1280 = vmatpush1.msra.mxu0 0.0
    %1281 = vmatprep.subr.mxu0 0.0
    %1282 = vmatpush1.msra.mxu0 0.0
    %1283 = vmatprep.subr.mxu0 0.0
    %1284 = vmatpush1.msra.mxu0 0.0
    %1285 = vmatprep.subr.mxu0 0.0
    %1286 = vmatpush1.msra.mxu0 0.0
    %1287 = vmatprep.subr.mxu0 0.0
    %1288 = vmatpush1.msra.mxu0 0.0
    %1289 = vmatprep.subr.mxu0 0.0
    %1290 = vmatpush1.msra.mxu0 0.0
    %1291 = vmatprep.subr.mxu0 0.0
    %1292 = vmatpush1.msra.mxu0 0.0
    %1293 = vmatprep.mubr.f32.mxu0 0.0
    %1294 = vmatmul.mubr.f32.gmra.mrb[0].mxu0 %v1157
    %v1295 = vpop.f32.mrb[0].mxu0
    %v1296 = vadd.f32 0.0, %v1295
    %v1297 = vpop.f32.mrb[0].mxu0
    %v1298 = vadd.f32 0.0, %v1297
    %1299 = vdwg.mxu0
    %v1304 = vrot.slane %v1225, 6
    %v1305 = vrot.slane %v1227, 6
    %v1306 = vrot.slane %v1296, 6
    %v1307 = vrot.slane %v1298, 6
    %v1312 = vadd.f32 %v849, %v1304
    %v1313 = vadd.f32 %v851, %v1305
    %v1314 = vadd.f32 %v920, %v1306
    %v1315 = vadd.f32 %v922, %v1307
    %v1316 = vxor.u32 %v1312, 2147483648
    %v1317 = vmul.f32 %v1316, 1.442695
    %v1318 = vpow.pop %v1317
    %v1319 = vadd.f32 %v1318, 1.0
    %v1320 = vrcp.pop %v1319
    %v1321 = vmul.f32 1.0, %v1320
    %v1322 = vxor.u32 %v1313, 2147483648
    %v1323 = vmul.f32 %v1322, 1.442695
    %v1324 = vpow.pop %v1323
    %v1325 = vadd.f32 %v1324, 1.0
    %v1326 = vrcp.pop %v1325
    %v1327 = vmul.f32 1.0, %v1326
    %v1328 = vtanh.pop %v1314
    %v1329 = vxor.u32 %v1315, 2147483648
    %v1330 = vmul.f32 %v1329, 1.442695
    %v1331 = vpow.pop %v1330
    %v1332 = vadd.f32 %v1331, 1.0
    %v1333 = vrcp.pop %v1332
    %v1334 = vmul.f32 1.0, %v1333
    %v1336 = vrot.slane %v1155, 6
    %v1338 = vmul.f32 %v1327, %v1336
    %v1339 = vmul.f32 %v1321, %v1328
    %v1340 = vadd.f32 %v1338, %v1339
    %v1341 = vtanh.pop %v1340
    %v1342 = vmul.f32 %v1334, %v1341
    %v1344 = vrot.slane %v1342, 2
    %1346 = vmatprep.subr.mxu0 %v925
    %1347 = vmatpush1.msra.mxu0 %v924
    %1348 = vmatprep.subr.mxu0 %v929
    %1349 = vmatpush1.msra.mxu0 %v928
    %1350 = vmatprep.subr.mxu0 %v933
    %1351 = vmatpush1.msra.mxu0 %v932
    %1352 = vmatprep.subr.mxu0 %v937
    %1353 = vmatpush1.msra.mxu0 %v936
    %1354 = vmatprep.subr.mxu0 %v941
    %1355 = vmatpush1.msra.mxu0 %v940
    %1356 = vmatprep.subr.mxu0 %v945
    %1357 = vmatpush1.msra.mxu0 %v944
    %1358 = vmatprep.subr.mxu0 %v949
    %1359 = vmatpush1.msra.mxu0 %v948
    %1360 = vmatprep.subr.mxu0 %v953
    %1361 = vmatpush1.msra.mxu0 %v952
    %1362 = vmatprep.subr.mxu0 %v957
    %1363 = vmatpush1.msra.mxu0 %v956
    %1364 = vmatprep.subr.mxu0 %v961
    %1365 = vmatpush1.msra.mxu0 %v960
    %1366 = vmatprep.subr.mxu0 %v965
    %1367 = vmatpush1.msra.mxu0 %v964
    %1368 = vmatprep.subr.mxu0 %v969
    %1369 = vmatpush1.msra.mxu0 %v968
    %1370 = vmatprep.subr.mxu0 %v973
    %1371 = vmatpush1.msra.mxu0 %v972
    %1372 = vmatprep.subr.mxu0 %v977
    %1373 = vmatpush1.msra.mxu0 %v976
    %1374 = vmatprep.subr.mxu0 %v981
    %1375 = vmatpush1.msra.mxu0 %v980
    %1376 = vmatprep.subr.mxu0 %v985
    %1377 = vmatpush1.msra.mxu0 %v984
    %1378 = vmatprep.subr.mxu0 0.0
    %1379 = vmatpush1.msra.mxu0 0.0
    %1380 = vmatprep.subr.mxu0 0.0
    %1381 = vmatpush1.msra.mxu0 0.0
    %1382 = vmatprep.subr.mxu0 0.0
    %1383 = vmatpush1.msra.mxu0 0.0
    %1384 = vmatprep.subr.mxu0 0.0
    %1385 = vmatpush1.msra.mxu0 0.0
    %1386 = vmatprep.subr.mxu0 0.0
    %1387 = vmatpush1.msra.mxu0 0.0
    %1388 = vmatprep.subr.mxu0 0.0
    %1389 = vmatpush1.msra.mxu0 0.0
    %1390 = vmatprep.subr.mxu0 0.0
    %1391 = vmatpush1.msra.mxu0 0.0
    %1392 = vmatprep.subr.mxu0 0.0
    %1393 = vmatpush1.msra.mxu0 0.0
    %1394 = vmatprep.subr.mxu0 0.0
    %1395 = vmatpush1.msra.mxu0 0.0
    %1396 = vmatprep.subr.mxu0 0.0
    %1397 = vmatpush1.msra.mxu0 0.0
    %1398 = vmatprep.subr.mxu0 0.0
    %1399 = vmatpush1.msra.mxu0 0.0
    %1400 = vmatprep.subr.mxu0 0.0
    %1401 = vmatpush1.msra.mxu0 0.0
    %1402 = vmatprep.subr.mxu0 0.0
    %1403 = vmatpush1.msra.mxu0 0.0
    %1404 = vmatprep.subr.mxu0 0.0
    %1405 = vmatpush1.msra.mxu0 0.0
    %1406 = vmatprep.subr.mxu0 0.0
    %1407 = vmatpush1.msra.mxu0 0.0
    %1408 = vmatprep.subr.mxu0 0.0
    %1409 = vmatpush1.msra.mxu0 0.0
    %1410 = vmatprep.mubr.f32.mxu0 0.0
    %1411 = vmatmul.mubr.f32.gmra.mrb[0].mxu0 %v1344
    %v1412 = vpop.f32.mrb[0].mxu0
    %v1413 = vadd.f32 0.0, %v1412
    %v1414 = vpop.f32.mrb[0].mxu0
    %v1415 = vadd.f32 0.0, %v1414
    %1416 = vdwg.mxu0
    %1417 = vmatprep.subr.mxu0 %v927
    %1418 = vmatpush1.msra.mxu0 %v926
    %1419 = vmatprep.subr.mxu0 %v931
    %1420 = vmatpush1.msra.mxu0 %v930
    %1421 = vmatprep.subr.mxu0 %v935
    %1422 = vmatpush1.msra.mxu0 %v934
    %1423 = vmatprep.subr.mxu0 %v939
    %1424 = vmatpush1.msra.mxu0 %v938
    %1425 = vmatprep.subr.mxu0 %v943
    %1426 = vmatpush1.msra.mxu0 %v942
    %1427 = vmatprep.subr.mxu0 %v947
    %1428 = vmatpush1.msra.mxu0 %v946
    %1429 = vmatprep.subr.mxu0 %v951
    %1430 = vmatpush1.msra.mxu0 %v950
    %1431 = vmatprep.subr.mxu0 %v955
    %1432 = vmatpush1.msra.mxu0 %v954
    %1433 = vmatprep.subr.mxu0 %v959
    %1434 = vmatpush1.msra.mxu0 %v958
    %1435 = vmatprep.subr.mxu0 %v963
    %1436 = vmatpush1.msra.mxu0 %v962
    %1437 = vmatprep.subr.mxu0 %v967
    %1438 = vmatpush1.msra.mxu0 %v966
    %1439 = vmatprep.subr.mxu0 %v971
    %1440 = vmatpush1.msra.mxu0 %v970
    %1441 = vmatprep.subr.mxu0 %v975
    %1442 = vmatpush1.msra.mxu0 %v974
    %1443 = vmatprep.subr.mxu0 %v979
    %1444 = vmatpush1.msra.mxu0 %v978
    %1445 = vmatprep.subr.mxu0 %v983
    %1446 = vmatpush1.msra.mxu0 %v982
    %1447 = vmatprep.subr.mxu0 %v987
    %1448 = vmatpush1.msra.mxu0 %v986
    %1449 = vmatprep.subr.mxu0 0.0
    %1450 = vmatpush1.msra.mxu0 0.0
    %1451 = vmatprep.subr.mxu0 0.0
    %1452 = vmatpush1.msra.mxu0 0.0
    %1453 = vmatprep.subr.mxu0 0.0
    %1454 = vmatpush1.msra.mxu0 0.0
    %1455 = vmatprep.subr.mxu0 0.0
    %1456 = vmatpush1.msra.mxu0 0.0
    %1457 = vmatprep.subr.mxu0 0.0
    %1458 = vmatpush1.msra.mxu0 0.0
    %1459 = vmatprep.subr.mxu0 0.0
    %1460 = vmatpush1.msra.mxu0 0.0
    %1461 = vmatprep.subr.mxu0 0.0
    %1462 = vmatpush1.msra.mxu0 0.0
    %1463 = vmatprep.subr.mxu0 0.0
    %1464 = vmatpush1.msra.mxu0 0.0
    %1465 = vmatprep.subr.mxu0 0.0
    %1466 = vmatpush1.msra.mxu0 0.0
    %1467 = vmatprep.subr.mxu0 0.0
    %1468 = vmatpush1.msra.mxu0 0.0
    %1469 = vmatprep.subr.mxu0 0.0
    %1470 = vmatpush1.msra.mxu0 0.0
    %1471 = vmatprep.subr.mxu0 0.0
    %1472 = vmatpush1.msra.mxu0 0.0
    %1473 = vmatprep.subr.mxu0 0.0
    %1474 = vmatpush1.msra.mxu0 0.0
    %1475 = vmatprep.subr.mxu0 0.0
    %1476 = vmatpush1.msra.mxu0 0.0
    %1477 = vmatprep.subr.mxu0 0.0
    %1478 = vmatpush1.msra.mxu0 0.0
    %1479 = vmatprep.subr.mxu0 0.0
    %1480 = vmatpush1.msra.mxu0 0.0
    %1481 = vmatprep.mubr.f32.mxu0 0.0
    %1482 = vmatmul.mubr.f32.gmra.mrb[0].mxu0 %v1344
    %v1483 = vpop.f32.mrb[0].mxu0
    %v1484 = vadd.f32 0.0, %v1483
    %v1485 = vpop.f32.mrb[0].mxu0
    %v1486 = vadd.f32 0.0, %v1485
    %1487 = vdwg.mxu0
    %v1492 = vrot.slane %v1413, 4
    %v1493 = vrot.slane %v1415, 4
    %v1494 = vrot.slane %v1484, 4
    %v1495 = vrot.slane %v1486, 4
    %v1500 = vadd.f32 %v849, %v1492
    %v1501 = vadd.f32 %v851, %v1493
    %v1502 = vadd.f32 %v920, %v1494
    %v1503 = vadd.f32 %v922, %v1495
    %v1504 = vxor.u32 %v1500, 2147483648
    %v1505 = vmul.f32 %v1504, 1.442695
    %v1506 = vpow.pop %v1505
    %v1507 = vadd.f32 %v1506, 1.0
    %v1508 = vrcp.pop %v1507
    %v1509 = vmul.f32 1.0, %v1508
    %v1510 = vxor.u32 %v1501, 2147483648
    %v1511 = vmul.f32 %v1510, 1.442695
    %v1512 = vpow.pop %v1511
    %v1513 = vadd.f32 %v1512, 1.0
    %v1514 = vrcp.pop %v1513
    %v1515 = vmul.f32 1.0, %v1514
    %v1516 = vtanh.pop %v1502
    %v1517 = vxor.u32 %v1503, 2147483648
    %v1518 = vmul.f32 %v1517, 1.442695
    %v1519 = vpow.pop %v1518
    %v1520 = vadd.f32 %v1519, 1.0
    %v1521 = vrcp.pop %v1520
    %v1522 = vmul.f32 1.0, %v1521
    %v1524 = vrot.slane %v1340, 6
    %v1526 = vmul.f32 %v1515, %v1524
    %v1527 = vmul.f32 %v1509, %v1516
    %v1528 = vadd.f32 %v1526, %v1527
    %v1529 = vtanh.pop %v1528
    %v1530 = vmul.f32 %v1522, %v1529
    %v1532 = vrot.slane %v1530, 4
    %1534 = vmatprep.subr.mxu0 %v925
    %1535 = vmatpush1.msra.mxu0 %v924
    %1536 = vmatprep.subr.mxu0 %v929
    %1537 = vmatpush1.msra.mxu0 %v928
    %1538 = vmatprep.subr.mxu0 %v933
    %1539 = vmatpush1.msra.mxu0 %v932
    %1540 = vmatprep.subr.mxu0 %v937
    %1541 = vmatpush1.msra.mxu0 %v936
    %1542 = vmatprep.subr.mxu0 %v941
    %1543 = vmatpush1.msra.mxu0 %v940
    %1544 = vmatprep.subr.mxu0 %v945
    %1545 = vmatpush1.msra.mxu0 %v944
    %1546 = vmatprep.subr.mxu0 %v949
    %1547 = vmatpush1.msra.mxu0 %v948
    %1548 = vmatprep.subr.mxu0 %v953
    %1549 = vmatpush1.msra.mxu0 %v952
    %1550 = vmatprep.subr.mxu0 %v957
    %1551 = vmatpush1.msra.mxu0 %v956
    %1552 = vmatprep.subr.mxu0 %v961
    %1553 = vmatpush1.msra.mxu0 %v960
    %1554 = vmatprep.subr.mxu0 %v965
    %1555 = vmatpush1.msra.mxu0 %v964
    %1556 = vmatprep.subr.mxu0 %v969
    %1557 = vmatpush1.msra.mxu0 %v968
    %1558 = vmatprep.subr.mxu0 %v973
    %1559 = vmatpush1.msra.mxu0 %v972
    %1560 = vmatprep.subr.mxu0 %v977
    %1561 = vmatpush1.msra.mxu0 %v976
    %1562 = vmatprep.subr.mxu0 %v981
    %1563 = vmatpush1.msra.mxu0 %v980
    %1564 = vmatprep.subr.mxu0 %v985
    %1565 = vmatpush1.msra.mxu0 %v984
    %1566 = vmatprep.subr.mxu0 0.0
    %1567 = vmatpush1.msra.mxu0 0.0
    %1568 = vmatprep.subr.mxu0 0.0
    %1569 = vmatpush1.msra.mxu0 0.0
    %1570 = vmatprep.subr.mxu0 0.0
    %1571 = vmatpush1.msra.mxu0 0.0
    %1572 = vmatprep.subr.mxu0 0.0
    %1573 = vmatpush1.msra.mxu0 0.0
    %1574 = vmatprep.subr.mxu0 0.0
    %1575 = vmatpush1.msra.mxu0 0.0
    %1576 = vmatprep.subr.mxu0 0.0
    %1577 = vmatpush1.msra.mxu0 0.0
    %1578 = vmatprep.subr.mxu0 0.0
    %1579 = vmatpush1.msra.mxu0 0.0
    %1580 = vmatprep.subr.mxu0 0.0
    %1581 = vmatpush1.msra.mxu0 0.0
    %1582 = vmatprep.subr.mxu0 0.0
    %1583 = vmatpush1.msra.mxu0 0.0
    %1584 = vmatprep.subr.mxu0 0.0
    %1585 = vmatpush1.msra.mxu0 0.0
    %1586 = vmatprep.subr.mxu0 0.0
    %1587 = vmatpush1.msra.mxu0 0.0
    %1588 = vmatprep.subr.mxu0 0.0
    %1589 = vmatpush1.msra.mxu0 0.0
    %1590 = vmatprep.subr.mxu0 0.0
    %1591 = vmatpush1.msra.mxu0 0.0
    %1592 = vmatprep.subr.mxu0 0.0
    %1593 = vmatpush1.msra.mxu0 0.0
    %1594 = vmatprep.subr.mxu0 0.0
    %1595 = vmatpush1.msra.mxu0 0.0
    %1596 = vmatprep.subr.mxu0 0.0
    %1597 = vmatpush1.msra.mxu0 0.0
    %1598 = vmatprep.mubr.f32.mxu0 0.0
    %1599 = vmatmul.mubr.f32.gmra.mrb[0].mxu0 %v1532
    %v1600 = vpop.f32.mrb[0].mxu0
    %v1601 = vadd.f32 0.0, %v1600
    %v1602 = vpop.f32.mrb[0].mxu0
    %v1603 = vadd.f32 0.0, %v1602
    %1604 = vdwg.mxu0
    %1605 = vmatprep.subr.mxu0 %v927
    %1606 = vmatpush1.msra.mxu0 %v926
    %1607 = vmatprep.subr.mxu0 %v931
    %1608 = vmatpush1.msra.mxu0 %v930
    %1609 = vmatprep.subr.mxu0 %v935
    %1610 = vmatpush1.msra.mxu0 %v934
    %1611 = vmatprep.subr.mxu0 %v939
    %1612 = vmatpush1.msra.mxu0 %v938
    %1613 = vmatprep.subr.mxu0 %v943
    %1614 = vmatpush1.msra.mxu0 %v942
    %1615 = vmatprep.subr.mxu0 %v947
    %1616 = vmatpush1.msra.mxu0 %v946
    %1617 = vmatprep.subr.mxu0 %v951
    %1618 = vmatpush1.msra.mxu0 %v950
    %1619 = vmatprep.subr.mxu0 %v955
    %1620 = vmatpush1.msra.mxu0 %v954
    %1621 = vmatprep.subr.mxu0 %v959
    %1622 = vmatpush1.msra.mxu0 %v958
    %1623 = vmatprep.subr.mxu0 %v963
    %1624 = vmatpush1.msra.mxu0 %v962
    %1625 = vmatprep.subr.mxu0 %v967
    %1626 = vmatpush1.msra.mxu0 %v966
    %1627 = vmatprep.subr.mxu0 %v971
    %1628 = vmatpush1.msra.mxu0 %v970
    %1629 = vmatprep.subr.mxu0 %v975
    %1630 = vmatpush1.msra.mxu0 %v974
    %1631 = vmatprep.subr.mxu0 %v979
    %1632 = vmatpush1.msra.mxu0 %v978
    %1633 = vmatprep.subr.mxu0 %v983
    %1634 = vmatpush1.msra.mxu0 %v982
    %1635 = vmatprep.subr.mxu0 %v987
    %1636 = vmatpush1.msra.mxu0 %v986
    %1637 = vmatprep.subr.mxu0 0.0
    %1638 = vmatpush1.msra.mxu0 0.0
    %1639 = vmatprep.subr.mxu0 0.0
    %1640 = vmatpush1.msra.mxu0 0.0
    %1641 = vmatprep.subr.mxu0 0.0
    %1642 = vmatpush1.msra.mxu0 0.0
    %1643 = vmatprep.subr.mxu0 0.0
    %1644 = vmatpush1.msra.mxu0 0.0
    %1645 = vmatprep.subr.mxu0 0.0
    %1646 = vmatpush1.msra.mxu0 0.0
    %1647 = vmatprep.subr.mxu0 0.0
    %1648 = vmatpush1.msra.mxu0 0.0
    %1649 = vmatprep.subr.mxu0 0.0
    %1650 = vmatpush1.msra.mxu0 0.0
    %1651 = vmatprep.subr.mxu0 0.0
    %1652 = vmatpush1.msra.mxu0 0.0
    %1653 = vmatprep.subr.mxu0 0.0
    %1654 = vmatpush1.msra.mxu0 0.0
    %1655 = vmatprep.subr.mxu0 0.0
    %1656 = vmatpush1.msra.mxu0 0.0
    %1657 = vmatprep.subr.mxu0 0.0
    %1658 = vmatpush1.msra.mxu0 0.0
    %1659 = vmatprep.subr.mxu0 0.0
    %1660 = vmatpush1.msra.mxu0 0.0
    %1661 = vmatprep.subr.mxu0 0.0
    %1662 = vmatpush1.msra.mxu0 0.0
    %1663 = vmatprep.subr.mxu0 0.0
    %1664 = vmatpush1.msra.mxu0 0.0
    %1665 = vmatprep.subr.mxu0 0.0
    %1666 = vmatpush1.msra.mxu0 0.0
    %1667 = vmatprep.subr.mxu0 0.0
    %1668 = vmatpush1.msra.mxu0 0.0
    %1669 = vmatprep.mubr.f32.mxu0 0.0
    %1670 = vmatmul.mubr.f32.gmra.mrb[0].mxu0 %v1532
    %v1671 = vpop.f32.mrb[0].mxu0
    %v1672 = vadd.f32 0.0, %v1671
    %v1673 = vpop.f32.mrb[0].mxu0
    %v1674 = vadd.f32 0.0, %v1673
    %1675 = vdwg.mxu0
    %v1680 = vrot.slane %v1601, 2
    %v1681 = vrot.slane %v1603, 2
    %v1682 = vrot.slane %v1672, 2
    %v1683 = vrot.slane %v1674, 2
    %v1688 = vadd.f32 %v849, %v1680
    %v1689 = vadd.f32 %v851, %v1681
    %v1690 = vadd.f32 %v920, %v1682
    %v1691 = vadd.f32 %v922, %v1683
    %v1692 = vxor.u32 %v1688, 2147483648
    %v1693 = vmul.f32 %v1692, 1.442695
    %v1694 = vpow.pop %v1693
    %v1695 = vadd.f32 %v1694, 1.0
    %v1696 = vrcp.pop %v1695
    %v1697 = vmul.f32 1.0, %v1696
    %v1698 = vxor.u32 %v1689, 2147483648
    %v1699 = vmul.f32 %v1698, 1.442695
    %v1700 = vpow.pop %v1699
    %v1701 = vadd.f32 %v1700, 1.0
    %v1702 = vrcp.pop %v1701
    %v1703 = vmul.f32 1.0, %v1702
    %v1704 = vtanh.pop %v1690
    %v1705 = vxor.u32 %v1691, 2147483648
    %v1706 = vmul.f32 %v1705, 1.442695
    %v1707 = vpow.pop %v1706
    %v1708 = vadd.f32 %v1707, 1.0
    %v1709 = vrcp.pop %v1708
    %v1710 = vmul.f32 1.0, %v1709
    %v1712 = vrot.slane %v1528, 6
    %v1714 = vmul.f32 %v1703, %v1712
    %v1715 = vmul.f32 %v1697, %v1704
    %v1716 = vadd.f32 %v1714, %v1715
    %v1717 = vtanh.pop %v1716
    %v1718 = vmul.f32 %v1710, %v1717
    %v1719 = vld [vmem:[%s14] sm:$0xff]
    %v1720 = vld [vmem:[%s14 + $0x8] sm:$0xff]
    %v1721 = vld [vmem:[%s14 + $0x10] sm:$0xff]
    %v1722 = vld [vmem:[%s14 + $0x18] sm:$0xff]
    %v1723 = vld [vmem:[%s14 + $0x20] sm:$0xff]
    %v1724 = vld [vmem:[%s14 + $0x28] sm:$0xff]
    %v1725 = vld [vmem:[%s14 + $0x30] sm:$0xff]
    %v1726 = vld [vmem:[%s14 + $0x38] sm:$0xff]
    %v1727 = vld [vmem:[%s14 + $0x40] sm:$0xff]
    %v1728 = vld [vmem:[%s14 + $0x48] sm:$0xff]
    %v1729 = vld [vmem:[%s14 + $0x50] sm:$0xff]
    %v1730 = vld [vmem:[%s14 + $0x58] sm:$0xff]
    %v1731 = vld [vmem:[%s14 + $0x60] sm:$0xff]
    %v1732 = vld [vmem:[%s14 + $0x68] sm:$0xff]
    %v1733 = vld [vmem:[%s14 + $0x70] sm:$0xff]
    %v1734 = vld [vmem:[%s14 + $0x78] sm:$0xff]
    %v1735 = vld [vmem:[%s15] sm:$0x1]
    %v1737 = vlaneseq
    %v1738 = vshrl.u32 %v1737, 7
    %v1739 = vsub.s32 0, %v1738
    %v1740 = vrot.slane %v1735, %v1739
    %v1743 = vrot.slane %v1718, 6
    %1745 = vmatprep.subr.mxu0 0.0
    %1746 = vmatpush1.msra.mxu0 %v1719
    %1747 = vmatprep.subr.mxu0 0.0
    %1748 = vmatpush1.msra.mxu0 %v1720
    %1749 = vmatprep.subr.mxu0 0.0
    %1750 = vmatpush1.msra.mxu0 %v1721
    %1751 = vmatprep.subr.mxu0 0.0
    %1752 = vmatpush1.msra.mxu0 %v1722
    %1753 = vmatprep.subr.mxu0 0.0
    %1754 = vmatpush1.msra.mxu0 %v1723
    %1755 = vmatprep.subr.mxu0 0.0
    %1756 = vmatpush1.msra.mxu0 %v1724
    %1757 = vmatprep.subr.mxu0 0.0
    %1758 = vmatpush1.msra.mxu0 %v1725
    %1759 = vmatprep.subr.mxu0 0.0
    %1760 = vmatpush1.msra.mxu0 %v1726
    %1761 = vmatprep.subr.mxu0 0.0
    %1762 = vmatpush1.msra.mxu0 %v1727
    %1763 = vmatprep.subr.mxu0 0.0
    %1764 = vmatpush1.msra.mxu0 %v1728
    %1765 = vmatprep.subr.mxu0 0.0
    %1766 = vmatpush1.msra.mxu0 %v1729
    %1767 = vmatprep.subr.mxu0 0.0
    %1768 = vmatpush1.msra.mxu0 %v1730
    %1769 = vmatprep.subr.mxu0 0.0
    %1770 = vmatpush1.msra.mxu0 %v1731
    %1771 = vmatprep.subr.mxu0 0.0
    %1772 = vmatpush1.msra.mxu0 %v1732
    %1773 = vmatprep.subr.mxu0 0.0
    %1774 = vmatpush1.msra.mxu0 %v1733
    %1775 = vmatprep.subr.mxu0 0.0
    %1776 = vmatpush1.msra.mxu0 %v1734
    %1777 = vmatprep.subr.mxu0 0.0
    %1778 = vmatpush1.msra.mxu0 0.0
    %1779 = vmatprep.subr.mxu0 0.0
    %1780 = vmatpush1.msra.mxu0 0.0
    %1781 = vmatprep.subr.mxu0 0.0
    %1782 = vmatpush1.msra.mxu0 0.0
    %1783 = vmatprep.subr.mxu0 0.0
    %1784 = vmatpush1.msra.mxu0 0.0
    %1785 = vmatprep.subr.mxu0 0.0
    %1786 = vmatpush1.msra.mxu0 0.0
    %1787 = vmatprep.subr.mxu0 0.0
    %1788 = vmatpush1.msra.mxu0 0.0
    %1789 = vmatprep.subr.mxu0 0.0
    %1790 = vmatpush1.msra.mxu0 0.0
    %1791 = vmatprep.subr.mxu0 0.0
    %1792 = vmatpush1.msra.mxu0 0.0
    %1793 = vmatprep.subr.mxu0 0.0
    %1794 = vmatpush1.msra.mxu0 0.0
    %1795 = vmatprep.subr.mxu0 0.0
    %1796 = vmatpush1.msra.mxu0 0.0
    %1797 = vmatprep.subr.mxu0 0.0
    %1798 = vmatpush1.msra.mxu0 0.0
    %1799 = vmatprep.subr.mxu0 0.0
    %1800 = vmatpush1.msra.mxu0 0.0
    %1801 = vmatprep.subr.mxu0 0.0
    %1802 = vmatpush1.msra.mxu0 0.0
    %1803 = vmatprep.subr.mxu0 0.0
    %1804 = vmatpush1.msra.mxu0 0.0
    %1805 = vmatprep.subr.mxu0 0.0
    %1806 = vmatpush1.msra.mxu0 0.0
    %1807 = vmatprep.subr.mxu0 0.0
    %1808 = vmatpush1.msra.mxu0 0.0
    %1809 = vmatprep.mubr.f32.mxu0 0.0
    %1810 = vmatmul.mubr.f32.gmra.mrb[0].mxu0 %v1743
    %v1811 = vpop.f32.mrb[0].mxu0
    %v1812 = vadd.f32 %v1740, %v1811
    %v1813 = vpop.f32.mrb[0].mxu0
    %1814 = vdwg.mxu0
    %1815 = vst [vmem:[#allocation2] sm:$0x3] %v1812
    // Predicated region
    $region66: #{cnn_lstm_forward.1} parent=1 // pred_check
      _
    $region67: #{cnn_lstm_forward.1} parent=1 // pred_check_branch
      %1817 = sbr.rel (0) target = $region69
    $region68: #{cnn_lstm_forward.1} parent=1 // pred_region
      %s1819 = ssub.s32 32, 32
      %1820 = vsyncadd [#allocation3], %s1819
      %s1822 = sshll.u32 [#allocation2], 4
      %s1823 = int_to_ptr.vmem [resolvable:$true] %s1822
      %1825 = dma.vmem_to_hbm [thread:$0]  %s1823, 32, %s16, [#allocation3]
    $region69: #{cnn_lstm_forward.1} parent=1 // pred_fallthru
      _
    // Predicated region
    $region70: #{cnn_lstm_forward.1} parent=1 // pred_check
      _
    $region71: #{cnn_lstm_forward.1} parent=1 // pred_check_branch
      %1827 = sbr.rel (0) target = $region73
    $region72: #{cnn_lstm_forward.1} parent=1 // pred_region
      %1828 = dma.done [#allocation3], 32
    $region73: #{cnn_lstm_forward.1} parent=1 // pred_fallthru
      _
    %1829 = vsyncpa [#allocation3], 1

</llo_original>
